<compile_context>
chip_gen: v7x
topology: tpu7x:2x2x1
jax: 0.10.0
libtpu: 0.0.40
codegen_flags: <defaults>
</compile_context>

<pallas_src>
import functools

import jax
import jax.numpy as jnp
from jax.experimental import pallas as pl
from jax.experimental.pallas import tpu as pltpu

NUM_ATOM_TYPE = 119
NUM_CHIRALITY_TAG = 3
NUM_BOND_TYPE = 5
NUM_BOND_DIRECTION = 3
N_EDGE_FEAT = NUM_BOND_TYPE + NUM_BOND_DIRECTION  # 8
EPS_BN = 1e-5
LANE = 128


def _round_up(x, m):
    return (x + m - 1) // m * m


def _pad_to(a, shape):
    return jnp.pad(a, [(0, t - s) for s, t in zip(a.shape, shape)])


# ----------------------------------------------------------------------------- kernel
def _fused_ginet_kernel(A_ref, h0_ref, C_ref, T_ref, w1_ref, b1_ref, w2_ref, b2_ref,
                        gamma_ref, beta_ref, pool_ref, fw_ref, fb_ref,
                        feat_out_ref, pool_out_ref, h_scr, *, num_nodes):
    layer = pl.program_id(0)
    last = pl.num_programs(0) - 1
    inv_n = jnp.float32(1.0 / num_nodes)

    @pl.when(layer == 0)
    def _init():
        h_scr[...] = h0_ref[...]

    h = h_scr[...]                                            # f32, persistent in VMEM

    # Per-layer edge bias: counts x table  (K=8, ~free next to A@h).
    bias = jnp.dot(C_ref[...], T_ref[0], preferred_element_type=jnp.float32)
    # Message passing + add aggregation (self loops folded into A / C).
    aggr = jnp.dot(A_ref[...], h.astype(jnp.bfloat16),
                   preferred_element_type=jnp.float32) + bias
    # GIN update MLP: Linear(emb, 2emb) -> ReLU -> Linear(2emb, emb).
    z = jnp.dot(aggr.astype(jnp.bfloat16), w1_ref[0],
                preferred_element_type=jnp.float32) + b1_ref[0]
    z = jnp.maximum(z, 0.0)
    z = jnp.dot(z.astype(jnp.bfloat16), w2_ref[0],
                preferred_element_type=jnp.float32) + b2_ref[0]

    # BatchNorm1d over node axis (training-mode batch stats, biased var), f32.
    s = jnp.sum(z, axis=0, keepdims=True)
    ss = jnp.sum(z * z, axis=0, keepdims=True)
    mean = s * inv_n
    var = jnp.maximum(ss * inv_n - mean * mean, 0.0)
    scale = gamma_ref[0] * jax.lax.rsqrt(var + EPS_BN)
    shift = beta_ref[0] - mean * scale
    z = z * scale + shift

    # dropout(p=0) is identity; ReLU applies to every layer except the last,
    # and the stored value is only consumed by the NEXT layer, so always store
    # the ReLU'd value and use un-ReLU'd z for the final pooling.
    h_scr[...] = jnp.maximum(z, 0.0)

    @pl.when(layer == last)
    def _finalize():
        pooled = jnp.dot(pool_ref[...], z.astype(jnp.bfloat16),
                         preferred_element_type=jnp.float32)
        pool_out_ref[...] = pooled
        feat_out_ref[...] = (jnp.dot(pooled.astype(jnp.bfloat16), fw_ref[...],
                                     preferred_element_type=jnp.float32)
                             + fb_ref[...])


# ----------------------------------------------------------------------------- wrapper
def ginet_forward(node_attr, edge_index, edge_attr, batch, params, *, num_graphs):
    """Returns (feat_lin(pooled), pooled) == (h, h_analysis) of the default path."""
    N = node_attr.shape[0]
    layers = params["layers"]
    L = len(layers)
    emb = layers[0]["w1"].shape[0]
    hid = layers[0]["w1"].shape[1]
    feat = params["feat_w"].shape[1]

    emb_p = _round_up(emb, LANE)
    hid_p = _round_up(hid, LANE)
    feat_p = _round_up(feat, LANE)
    g_p = _round_up(num_graphs, 8)

    # --- initial node features from atom-type / chirality embeddings (cheap gathers)
    h0 = params["xe1"][node_attr[:, 0]] + params["xe2"][node_attr[:, 1]]
    h0 = _pad_to(h0, (N, emb_p)).astype(jnp.float32)

    # --- adjacency-count matrix with self loops (exact integers -> bf16 exact)
    loop = jnp.arange(N, dtype=edge_index.dtype)
    src = jnp.concatenate([edge_index[0], loop])
    tgt = jnp.concatenate([edge_index[1], loop])
    self_loop_attr = jnp.stack(
        [jnp.full((N,), 4, dtype=edge_attr.dtype),
         jnp.zeros((N,), dtype=edge_attr.dtype)], axis=1)
    ea = jnp.concatenate([edge_attr, self_loop_attr], axis=0)
    A = jnp.zeros((N, N), jnp.float32).at[tgt, src].add(1.0).astype(jnp.bfloat16)

    # --- per-target edge-attribute count matrix C[N, 8] (5 bond types | 3 directions)
    bt1h = (ea[:, 0][:, None] == jnp.arange(NUM_BOND_TYPE)[None, :]).astype(jnp.float32)
    bd1h = (ea[:, 1][:, None] == jnp.arange(NUM_BOND_DIRECTION)[None, :]).astype(jnp.float32)
    C = jnp.zeros((N, N_EDGE_FEAT), jnp.float32).at[tgt].add(
        jnp.concatenate([bt1h, bd1h], axis=1)).astype(jnp.bfloat16)

    # --- stacked per-layer edge tables T[L, 8, emb_p] = [E1_l ; E2_l]
    T = jnp.stack([jnp.concatenate([p["e1"], p["e2"]], axis=0) for p in layers])
    T = jnp.pad(T, ((0, 0), (0, 0), (0, emb_p - emb))).astype(jnp.bfloat16)

    # --- mean-pool matrix (padded graph rows are zero)
    onehot = (batch[None, :] == jnp.arange(num_graphs)[:, None]).astype(jnp.float32)
    pool_mat = onehot / jnp.maximum(onehot.sum(axis=1, keepdims=True), 1.0)
    pool_mat = _pad_to(pool_mat, (g_p, N)).astype(jnp.bfloat16)

    # --- stacked, lane-padded layer params (zero padding keeps math exact)
    W1 = jnp.stack([_pad_to(p["w1"], (emb_p, hid_p)) for p in layers]).astype(jnp.bfloat16)
    B1 = jnp.stack([_pad_to(p["b1"][None, :], (1, hid_p)) for p in layers])
    W2 = jnp.stack([_pad_to(p["w2"], (hid_p, emb_p)) for p in layers]).astype(jnp.bfloat16)
    B2 = jnp.stack([_pad_to(p["b2"][None, :], (1, emb_p)) for p in layers])
    GM = jnp.stack([_pad_to(p["gamma"][None, :], (1, emb_p)) for p in layers])
    BT = jnp.stack([_pad_to(p["beta"][None, :], (1, emb_p)) for p in layers])
    FW = _pad_to(params["feat_w"], (emb_p, feat_p)).astype(jnp.bfloat16)
    FB = _pad_to(params["feat_b"][None, :], (1, feat_p))

    flops = int(2 * L * (N * N * emb_p + N * N_EDGE_FEAT * emb_p
                         + N * emb_p * hid_p + N * hid_p * emb_p)
                + 2 * (g_p * N * emb_p + g_p * emb_p * feat_p))
    bytes_accessed = int(
        (A.size + C.size + T.size + W1.size + W2.size + FW.size + pool_mat.size) * 2
        + (h0.size + B1.size + B2.size + GM.size + BT.size + FB.size) * 4
        + (g_p * feat_p + g_p * emb_p) * 4)

    # Constant-block inputs (A, h0, C, pool, FW, FB) stay VMEM-resident across the
    # layer grid; per-layer weights/tables are double-buffered by the pipeline.
    same2 = lambda l: (0, 0)
    perlayer3 = lambda l: (l, 0, 0)
    grid_spec = pltpu.PrefetchScalarGridSpec(
        num_scalar_prefetch=0,
        grid=(L,),
        in_specs=[
            pl.BlockSpec((N, N), same2),                 # A
            pl.BlockSpec((N, emb_p), same2),             # h0
            pl.BlockSpec((N, N_EDGE_FEAT), same2),       # C
            pl.BlockSpec((1, N_EDGE_FEAT, emb_p), perlayer3),  # T
            pl.BlockSpec((1, emb_p, hid_p), perlayer3),  # W1
            pl.BlockSpec((1, 1, hid_p), perlayer3),      # B1
            pl.BlockSpec((1, hid_p, emb_p), perlayer3),  # W2
            pl.BlockSpec((1, 1, emb_p), perlayer3),      # B2
            pl.BlockSpec((1, 1, emb_p), perlayer3),      # gamma
            pl.BlockSpec((1, 1, emb_p), perlayer3),      # beta
            pl.BlockSpec((g_p, N), same2),               # pool_mat
            pl.BlockSpec((emb_p, feat_p), same2),        # FW
            pl.BlockSpec((1, feat_p), same2),            # FB
        ],
        out_specs=(pl.BlockSpec((g_p, feat_p), same2),
                   pl.BlockSpec((g_p, emb_p), same2)),
        scratch_shapes=[pltpu.VMEM((N, emb_p), jnp.float32)],   # persistent h
    )

    kernel = functools.partial(_fused_ginet_kernel, num_nodes=N)
    feat_out, pool_out = pl.pallas_call(
        kernel,
        out_shape=(jax.ShapeDtypeStruct((g_p, feat_p), jnp.float32),
                   jax.ShapeDtypeStruct((g_p, emb_p), jnp.float32)),
        grid_spec=grid_spec,
        compiler_params=pltpu.CompilerParams(dimension_semantics=("arbitrary",)),
        cost_estimate=pl.CostEstimate(flops=flops, transcendentals=0,
                                      bytes_accessed=bytes_accessed),
    )(A, h0, C, T, W1, B1, W2, B2, GM, BT, pool_mat, FW, FB)

    # TODO(synk): the cfg.train.fusion_approach == 'attention' branch (per-graph
    # padding to BERT max_length + padding_masks) is host-side Python glue in the
    # reference module and is not implemented here.
    return feat_out[:num_graphs, :feat], pool_out[:num_graphs, :emb]


# ----------------------------------------------------------------------------- pure-JAX reference
def reference_forward(node_attr, edge_index, edge_attr, batch, params, num_graphs):
    N = node_attr.shape[0]
    layers = params["layers"]
    L = len(layers)
    h = params["xe1"][node_attr[:, 0]] + params["xe2"][node_attr[:, 1]]

    loop = jnp.arange(N, dtype=edge_index.dtype)
    src = jnp.concatenate([edge_index[0], loop])
    tgt = jnp.concatenate([edge_index[1], loop])
    self_loop_attr = jnp.stack(
        [jnp.full((N,), 4, dtype=edge_attr.dtype),
         jnp.zeros((N,), dtype=edge_attr.dtype)], axis=1)
    ea = jnp.concatenate([edge_attr, self_loop_attr], axis=0)

    for layer, p in enumerate(layers):
        edge_emb = p["e1"][ea[:, 0]] + p["e2"][ea[:, 1]]
        msg = h[src] + edge_emb
        aggr = jnp.zeros((N, h.shape[1]), jnp.float32).at[tgt].add(msg)
        z = jnp.maximum(aggr @ p["w1"] + p["b1"], 0.0) @ p["w2"] + p["b2"]
        mean = jnp.mean(z, axis=0, keepdims=True)
        var = jnp.mean((z - mean) ** 2, axis=0, keepdims=True)
        z = (z - mean) * jax.lax.rsqrt(var + EPS_BN) * p["gamma"] + p["beta"]
        h = z if layer == L - 1 else jnp.maximum(z, 0.0)

    onehot = (batch[None, :] == jnp.arange(num_graphs)[:, None]).astype(jnp.float32)
    pooled = (onehot @ h) / jnp.maximum(onehot.sum(axis=1, keepdims=True), 1.0)
    return pooled @ params["feat_w"] + params["feat_b"], pooled


# ----------------------------------------------------------------------------- params
def xavier_uniform(key, shape):
    fan_in, fan_out = shape
    bound = (6.0 / (fan_in + fan_out)) ** 0.5
    return jax.random.uniform(key, shape, jnp.float32, -bound, bound)


def init_params(key, num_layer, emb_dim, feat_dim):
    key, kx1, kx2 = jax.random.split(key, 3)
    layers = []
    for _ in range(num_layer):
        key, *ks = jax.random.split(key, 7)
        layers.append(dict(
            e1=xavier_uniform(ks[0], (NUM_BOND_TYPE, emb_dim)),
            e2=xavier_uniform(ks[1], (NUM_BOND_DIRECTION, emb_dim)),
            w1=xavier_uniform(ks[2], (emb_dim, 2 * emb_dim)),
            b1=0.01 * jax.random.normal(ks[3], (2 * emb_dim,), jnp.float32),
            w2=xavier_uniform(ks[4], (2 * emb_dim, emb_dim)),
            b2=0.01 * jax.random.normal(ks[5], (emb_dim,), jnp.float32),
            gamma=jnp.ones((emb_dim,), jnp.float32),
            beta=jnp.zeros((emb_dim,), jnp.float32),
        ))
    key, kw, kb = jax.random.split(key, 3)
    return dict(layers=layers,
                xe1=xavier_uniform(kx1, (NUM_ATOM_TYPE, emb_dim)),
                xe2=xavier_uniform(kx2, (NUM_CHIRALITY_TAG, emb_dim)),
                feat_w=xavier_uniform(kw, (emb_dim, feat_dim)),
                feat_b=0.01 * jax.random.normal(kb, (feat_dim,), jnp.float32))


# ----------------------------------------------------------------------------- main
if __name__ == "__main__":
    NUM_LAYER, EMB_DIM, FEAT_DIM = 5, 32, 16
    N_NODES, N_EDGES, N_GRAPHS = 16, 24, 2

    root = jax.random.PRNGKey(0)
    k_at, k_ch, k_ei, k_bt, k_bd, k_p = jax.random.split(root, 6)

    node_attr = jnp.stack(
        [jax.random.randint(k_at, (N_NODES,), 0, NUM_ATOM_TYPE, jnp.int32),      # atom type
         jax.random.randint(k_ch, (N_NODES,), 0, NUM_CHIRALITY_TAG, jnp.int32)], # chirality
        axis=1)
    edge_index = jax.random.randint(k_ei, (2, N_EDGES), 0, N_NODES, jnp.int32)
    edge_attr = jnp.stack(
        [jax.random.randint(k_bt, (N_EDGES,), 0, 4, jnp.int32),                  # bond type
         jax.random.randint(k_bd, (N_EDGES,), 0, NUM_BOND_DIRECTION, jnp.int32)],# bond direction
        axis=1)
    batch = jnp.concatenate(
        [jnp.zeros((N_NODES // 2,), jnp.int32),
         jnp.ones((N_NODES - N_NODES // 2,), jnp.int32)])

    params = init_params(k_p, NUM_LAYER, EMB_DIM, FEAT_DIM)

    fwd = jax.jit(ginet_forward, static_argnames=("num_graphs",))
    out, h_analysis = fwd(node_attr, edge_index, edge_attr, batch, params,
                          num_graphs=N_GRAPHS)
    out = jax.block_until_ready(out)
    h_analysis = jax.block_until_ready(h_analysis)

    ref_out, ref_pool = reference_forward(node_attr, edge_index, edge_attr, batch,
                                          params, N_GRAPHS)

    assert out.shape == (N_GRAPHS, FEAT_DIM)
    assert h_analysis.shape == (N_GRAPHS, EMB_DIM)
    # bf16 MXU operands (per perf review) vs. a pure-f32 reference across 5
    # BatchNorm'd layers => a few-percent tolerance is the expected envelope.
    assert jnp.allclose(out, ref_out, atol=5e-2, rtol=5e-2), "feat_lin output mismatch"
    assert jnp.allclose(h_analysis, ref_pool, atol=5e-2, rtol=5e-2), "pooled output mismatch"

    print("KERNEL_OK")
</pallas_src>

<mosaic_0001>
module attributes {stable_mosaic.version = 11 : i64} {
  func.func @_fused_ginet_kernel(%arg0: i32, %arg1: memref<16x16xbf16, #tpu.memory_space<vmem>>, %arg2: memref<16x128xf32, #tpu.memory_space<vmem>>, %arg3: memref<16x8xbf16, #tpu.memory_space<vmem>>, %arg4: memref<1x8x128xbf16, #tpu.memory_space<vmem>>, %arg5: memref<1x128x128xbf16, #tpu.memory_space<vmem>>, %arg6: memref<1x1x128xf32, #tpu.memory_space<vmem>>, %arg7: memref<1x128x128xbf16, #tpu.memory_space<vmem>>, %arg8: memref<1x1x128xf32, #tpu.memory_space<vmem>>, %arg9: memref<1x1x128xf32, #tpu.memory_space<vmem>>, %arg10: memref<1x1x128xf32, #tpu.memory_space<vmem>>, %arg11: memref<8x16xbf16, #tpu.memory_space<vmem>>, %arg12: memref<128x128xbf16, #tpu.memory_space<vmem>>, %arg13: memref<1x128xf32, #tpu.memory_space<vmem>>, %arg14: memref<8x128xf32, #tpu.memory_space<vmem>>, %arg15: memref<8x128xf32, #tpu.memory_space<vmem>>, %arg16: memref<16x128xf32, #tpu.memory_space<vmem>>) attributes {dimension_semantics = [#tpu.dimension_semantics<arbitrary>], iteration_bounds = array<i64: 5>, scalar_prefetch = 0 : i64, scratch_operands = 1 : i64, tpu.core_type = #tpu.core_type<tc>, window_params = [{pipeline_mode = #tpu.pipeline_mode<synchronous>, transform_indices = @transform_0, window_bounds = array<i64: 16, 16>}, {pipeline_mode = #tpu.pipeline_mode<synchronous>, transform_indices = @transform_1, window_bounds = array<i64: 16, 128>}, {pipeline_mode = #tpu.pipeline_mode<synchronous>, transform_indices = @transform_2, window_bounds = array<i64: 16, 8>}, {transform_indices = @transform_3, window_bounds = array<i64: 1, 8, 128>}, {transform_indices = @transform_4, window_bounds = array<i64: 1, 128, 128>}, {transform_indices = @transform_5, window_bounds = array<i64: 1, 1, 128>}, {transform_indices = @transform_6, window_bounds = array<i64: 1, 128, 128>}, {transform_indices = @transform_7, window_bounds = array<i64: 1, 1, 128>}, {transform_indices = @transform_8, window_bounds = array<i64: 1, 1, 128>}, {transform_indices = @transform_9, window_bounds = array<i64: 1, 1, 128>}, {pipeline_mode = #tpu.pipeline_mode<synchronous>, transform_indices = @transform_10, window_bounds = array<i64: 8, 16>}, {pipeline_mode = #tpu.pipeline_mode<synchronous>, transform_indices = @transform_11, window_bounds = array<i64: 128, 128>}, {pipeline_mode = #tpu.pipeline_mode<synchronous>, transform_indices = @transform_12, window_bounds = array<i64: 1, 128>}, {pipeline_mode = #tpu.pipeline_mode<synchronous>, transform_indices = @transform_13, window_bounds = array<i64: 8, 128>}, {pipeline_mode = #tpu.pipeline_mode<synchronous>, transform_indices = @transform_14, window_bounds = array<i64: 8, 128>}]} {
    %c0_i32 = arith.constant 0 : i32
    %0 = arith.cmpi eq, %arg0, %c0_i32 : i32
    %1 = arith.extui %0 : i1 to i32
    %c0_i32_0 = arith.constant 0 : i32
    %2 = arith.cmpi ne, %1, %c0_i32_0 : i32
    scf.if %2 {
      %c0_41 = arith.constant 0 : index
      %c0_42 = arith.constant 0 : index
      %63 = vector.load %arg2[%c0_41, %c0_42] : memref<16x128xf32, #tpu.memory_space<vmem>>, vector<16x128xf32>
      %c0_43 = arith.constant 0 : index
      %c0_44 = arith.constant 0 : index
      %64 = vector.load %arg16[%c0_43, %c0_44] : memref<16x128xf32, #tpu.memory_space<vmem>>, vector<16x128xf32>
      tpu.vector_store %arg16[%c0_43, %c0_44], %63 {strides = array<i32>} : memref<16x128xf32, #tpu.memory_space<vmem>>, vector<16x128xf32>,
    } else {
    }
    %c0 = arith.constant 0 : index
    %c0_1 = arith.constant 0 : index
    %3 = vector.load %arg16[%c0, %c0_1] : memref<16x128xf32, #tpu.memory_space<vmem>>, vector<16x128xf32>
    %c0_2 = arith.constant 0 : index
    %c0_3 = arith.constant 0 : index
    %4 = vector.load %arg3[%c0_2, %c0_3] : memref<16x8xbf16, #tpu.memory_space<vmem>>, vector<16x8xbf16>
    %c0_4 = arith.constant 0 : index
    %c0_5 = arith.constant 0 : index
    %c0_6 = arith.constant 0 : index
    %5 = vector.load %arg4[%c0_4, %c0_5, %c0_6] : memref<1x8x128xbf16, #tpu.memory_space<vmem>>, vector<1x8x128xbf16>
    %6 = vector.shape_cast %5 : vector<1x8x128xbf16> to vector<8x128xbf16>
    %cst = arith.constant dense<0.000000e+00> : vector<16x128xf32>
    %7 = tpu.matmul %4, %6, %cst {dimension_numbers = #tpu.dot_dimension_numbers<[1], [0], [0], [1], [0, 0, 1, 1], [], []>} : vector<16x8xbf16>, vector<8x128xbf16>, vector<16x128xf32> -> vector<16x128xf32>
    %c0_7 = arith.constant 0 : index
    %c0_8 = arith.constant 0 : index
    %8 = vector.load %arg1[%c0_7, %c0_8] : memref<16x16xbf16, #tpu.memory_space<vmem>>, vector<16x16xbf16>
    %9 = arith.truncf %3 : vector<16x128xf32> to vector<16x128xbf16>
    %cst_9 = arith.constant dense<0.000000e+00> : vector<16x128xf32>
    %10 = tpu.matmul %8, %9, %cst_9 {dimension_numbers = #tpu.dot_dimension_numbers<[1], [0], [0], [1], [0, 0, 1, 1], [], []>} : vector<16x16xbf16>, vector<16x128xbf16>, vector<16x128xf32> -> vector<16x128xf32>
    %11 = arith.addf %10, %7 : vector<16x128xf32>
    %12 = arith.truncf %11 : vector<16x128xf32> to vector<16x128xbf16>
    %c0_10 = arith.constant 0 : index
    %c0_11 = arith.constant 0 : index
    %c0_12 = arith.constant 0 : index
    %13 = vector.load %arg5[%c0_10, %c0_11, %c0_12] : memref<1x128x128xbf16, #tpu.memory_space<vmem>>, vector<1x128x128xbf16>
    %14 = vector.shape_cast %13 : vector<1x128x128xbf16> to vector<128x128xbf16>
    %cst_13 = arith.constant dense<0.000000e+00> : vector<16x128xf32>
    %15 = tpu.matmul %12, %14, %cst_13 {dimension_numbers = #tpu.dot_dimension_numbers<[1], [0], [0], [1], [0, 0, 1, 1], [], []>} : vector<16x128xbf16>, vector<128x128xbf16>, vector<16x128xf32> -> vector<16x128xf32>
    %c0_14 = arith.constant 0 : index
    %c0_15 = arith.constant 0 : index
    %c0_16 = arith.constant 0 : index
    %16 = vector.load %arg6[%c0_14, %c0_15, %c0_16] : memref<1x1x128xf32, #tpu.memory_space<vmem>>, vector<1x1x128xf32>
    %17 = vector.shape_cast %16 : vector<1x1x128xf32> to vector<1x128xf32>
    %18 = vector.broadcast %17 : vector<1x128xf32> to vector<16x128xf32>
    %19 = arith.addf %15, %18 : vector<16x128xf32>
    %cst_17 = arith.constant 0.000000e+00 : f32
    %20 = vector.broadcast %cst_17 : f32 to vector<16x128xf32>
    %21 = arith.maximumf %19, %20 : vector<16x128xf32>
    %22 = arith.truncf %21 : vector<16x128xf32> to vector<16x128xbf16>
    %c0_18 = arith.constant 0 : index
    %c0_19 = arith.constant 0 : index
    %c0_20 = arith.constant 0 : index
    %23 = vector.load %arg7[%c0_18, %c0_19, %c0_20] : memref<1x128x128xbf16, #tpu.memory_space<vmem>>, vector<1x128x128xbf16>
    %24 = vector.shape_cast %23 : vector<1x128x128xbf16> to vector<128x128xbf16>
    %cst_21 = arith.constant dense<0.000000e+00> : vector<16x128xf32>
    %25 = tpu.matmul %22, %24, %cst_21 {dimension_numbers = #tpu.dot_dimension_numbers<[1], [0], [0], [1], [0, 0, 1, 1], [], []>} : vector<16x128xbf16>, vector<128x128xbf16>, vector<16x128xf32> -> vector<16x128xf32>
    %c0_22 = arith.constant 0 : index
    %c0_23 = arith.constant 0 : index
    %c0_24 = arith.constant 0 : index
    %26 = vector.load %arg8[%c0_22, %c0_23, %c0_24] : memref<1x1x128xf32, #tpu.memory_space<vmem>>, vector<1x1x128xf32>
    %27 = vector.shape_cast %26 : vector<1x1x128xf32> to vector<1x128xf32>
    %28 = vector.broadcast %27 : vector<1x128xf32> to vector<16x128xf32>
    %29 = arith.addf %25, %28 : vector<16x128xf32>
    %cst_25 = arith.constant dense<0.000000e+00> : vector<128xf32>
    %30 = vector.multi_reduction <add>, %29, %cst_25 [0] : vector<16x128xf32> to vector<128xf32>
    %31 = vector.shape_cast %30 : vector<128xf32> to vector<1x128xf32>
    %32 = arith.mulf %29, %29 : vector<16x128xf32>
    %cst_26 = arith.constant dense<0.000000e+00> : vector<128xf32>
    %33 = vector.multi_reduction <add>, %32, %cst_26 [0] : vector<16x128xf32> to vector<128xf32>
    %34 = vector.shape_cast %33 : vector<128xf32> to vector<1x128xf32>
    %cst_27 = arith.constant 6.250000e-02 : f32
    %35 = vector.broadcast %cst_27 : f32 to vector<1x128xf32>
    %36 = arith.mulf %31, %35 : vector<1x128xf32>
    %cst_28 = arith.constant 6.250000e-02 : f32
    %37 = vector.broadcast %cst_28 : f32 to vector<1x128xf32>
    %38 = arith.mulf %34, %37 : vector<1x128xf32>
    %39 = arith.mulf %36, %36 : vector<1x128xf32>
    %40 = arith.subf %38, %39 : vector<1x128xf32>
    %cst_29 = arith.constant 0.000000e+00 : f32
    %41 = vector.broadcast %cst_29 : f32 to vector<1x128xf32>
    %42 = arith.maximumf %40, %41 : vector<1x128xf32>
    %c0_30 = arith.constant 0 : index
    %c0_31 = arith.constant 0 : index
    %c0_32 = arith.constant 0 : index
    %43 = vector.load %arg9[%c0_30, %c0_31, %c0_32] : memref<1x1x128xf32, #tpu.memory_space<vmem>>, vector<1x1x128xf32>
    %44 = vector.shape_cast %43 : vector<1x1x128xf32> to vector<1x128xf32>
    %cst_33 = arith.constant 9.99999974E-6 : f32
    %45 = vector.broadcast %cst_33 : f32 to vector<1x128xf32>
    %46 = arith.addf %42, %45 : vector<1x128xf32>
    %47 = math.rsqrt %46 : vector<1x128xf32>
    %48 = arith.mulf %44, %47 : vector<1x128xf32>
    %c0_34 = arith.constant 0 : index
    %c0_35 = arith.constant 0 : index
    %c0_36 = arith.constant 0 : index
    %49 = vector.load %arg10[%c0_34, %c0_35, %c0_36] : memref<1x1x128xf32, #tpu.memory_space<vmem>>, vector<1x1x128xf32>
    %50 = vector.shape_cast %49 : vector<1x1x128xf32> to vector<1x128xf32>
    %51 = arith.mulf %36, %48 : vector<1x128xf32>
    %52 = arith.subf %50, %51 : vector<1x128xf32>
    %53 = vector.broadcast %48 : vector<1x128xf32> to vector<16x128xf32>
    %54 = arith.mulf %29, %53 : vector<16x128xf32>
    %55 = vector.broadcast %52 : vector<1x128xf32> to vector<16x128xf32>
    %56 = arith.addf %54, %55 : vector<16x128xf32>
    %cst_37 = arith.constant 0.000000e+00 : f32
    %57 = vector.broadcast %cst_37 : f32 to vector<16x128xf32>
    %58 = arith.maximumf %56, %57 : vector<16x128xf32>
    %c0_38 = arith.constant 0 : index
    %c0_39 = arith.constant 0 : index
    %59 = vector.load %arg16[%c0_38, %c0_39] : memref<16x128xf32, #tpu.memory_space<vmem>>, vector<16x128xf32>
    tpu.vector_store %arg16[%c0_38, %c0_39], %58 {strides = array<i32>} : memref<16x128xf32, #tpu.memory_space<vmem>>, vector<16x128xf32>,
    %c4_i32 = arith.constant 4 : i32
    %60 = arith.cmpi eq, %arg0, %c4_i32 : i32
    %61 = arith.extui %60 : i1 to i32
    %c0_i32_40 = arith.constant 0 : i32
    %62 = arith.cmpi ne, %61, %c0_i32_40 : i32
    scf.if %62 {
      %c0_41 = arith.constant 0 : index
      %c0_42 = arith.constant 0 : index
      %63 = vector.load %arg11[%c0_41, %c0_42] : memref<8x16xbf16, #tpu.memory_space<vmem>>, vector<8x16xbf16>
      %64 = arith.truncf %56 : vector<16x128xf32> to vector<16x128xbf16>
      %cst_43 = arith.constant dense<0.000000e+00> : vector<8x128xf32>
      %65 = tpu.matmul %63, %64, %cst_43 {dimension_numbers = #tpu.dot_dimension_numbers<[1], [0], [0], [1], [0, 0, 1, 1], [], []>} : vector<8x16xbf16>, vector<16x128xbf16>, vector<8x128xf32> -> vector<8x128xf32>
      %c0_44 = arith.constant 0 : index
      %c0_45 = arith.constant 0 : index
      %66 = vector.load %arg15[%c0_44, %c0_45] : memref<8x128xf32, #tpu.memory_space<vmem>>, vector<8x128xf32>
      tpu.vector_store %arg15[%c0_44, %c0_45], %65 {strides = array<i32>} : memref<8x128xf32, #tpu.memory_space<vmem>>, vector<8x128xf32>,
      %67 = arith.truncf %65 : vector<8x128xf32> to vector<8x128xbf16>
      %c0_46 = arith.constant 0 : index
      %c0_47 = arith.constant 0 : index
      %68 = vector.load %arg12[%c0_46, %c0_47] : memref<128x128xbf16, #tpu.memory_space<vmem>>, vector<128x128xbf16>
      %cst_48 = arith.constant dense<0.000000e+00> : vector<8x128xf32>
      %69 = tpu.matmul %67, %68, %cst_48 {dimension_numbers = #tpu.dot_dimension_numbers<[1], [0], [0], [1], [0, 0, 1, 1], [], []>} : vector<8x128xbf16>, vector<128x128xbf16>, vector<8x128xf32> -> vector<8x128xf32>
      %c0_49 = arith.constant 0 : index
      %c0_50 = arith.constant 0 : index
      %70 = vector.load %arg13[%c0_49, %c0_50] : memref<1x128xf32, #tpu.memory_space<vmem>>, vector<1x128xf32>
      %71 = vector.broadcast %70 : vector<1x128xf32> to vector<8x128xf32>
      %72 = arith.addf %69, %71 : vector<8x128xf32>
      %c0_51 = arith.constant 0 : index
      %c0_52 = arith.constant 0 : index
      %73 = vector.load %arg14[%c0_51, %c0_52] : memref<8x128xf32, #tpu.memory_space<vmem>>, vector<8x128xf32>
      tpu.vector_store %arg14[%c0_51, %c0_52], %72 {strides = array<i32>} : memref<8x128xf32, #tpu.memory_space<vmem>>, vector<8x128xf32>,
    } else {
    }
    return
  }
  func.func @transform_0(%arg0: i32) -> (i32, i32) {
    %c0_i32 = arith.constant 0 : i32
    %c0_i32_0 = arith.constant 0 : i32
    %c0_i32_1 = arith.constant 0 : i32
    return %c0_i32, %c0_i32_0 : i32, i32
  }
  func.func @transform_1(%arg0: i32) -> (i32, i32) {
    %c0_i32 = arith.constant 0 : i32
    %c0_i32_0 = arith.constant 0 : i32
    %c0_i32_1 = arith.constant 0 : i32
    return %c0_i32, %c0_i32_0 : i32, i32
  }
  func.func @transform_2(%arg0: i32) -> (i32, i32) {
    %c0_i32 = arith.constant 0 : i32
    %c0_i32_0 = arith.constant 0 : i32
    %c0_i32_1 = arith.constant 0 : i32
    return %c0_i32, %c0_i32_0 : i32, i32
  }
  func.func @transform_3(%arg0: i32) -> (i32, i32, i32) {
    %c0_i32 = arith.constant 0 : i32
    %c0_i32_0 = arith.constant 0 : i32
    %c0_i32_1 = arith.constant 0 : i32
    return %arg0, %c0_i32, %c0_i32_0 : i32, i32, i32
  }
  func.func @transform_4(%arg0: i32) -> (i32, i32, i32) {
    %c0_i32 = arith.constant 0 : i32
    %c0_i32_0 = arith.constant 0 : i32
    %c0_i32_1 = arith.constant 0 : i32
    return %arg0, %c0_i32, %c0_i32_0 : i32, i32, i32
  }
  func.func @transform_5(%arg0: i32) -> (i32, i32, i32) {
    %c0_i32 = arith.constant 0 : i32
    %c0_i32_0 = arith.constant 0 : i32
    %c0_i32_1 = arith.constant 0 : i32
    return %arg0, %c0_i32, %c0_i32_0 : i32, i32, i32
  }
  func.func @transform_6(%arg0: i32) -> (i32, i32, i32) {
    %c0_i32 = arith.constant 0 : i32
    %c0_i32_0 = arith.constant 0 : i32
    %c0_i32_1 = arith.constant 0 : i32
    return %arg0, %c0_i32, %c0_i32_0 : i32, i32, i32
  }
  func.func @transform_7(%arg0: i32) -> (i32, i32, i32) {
    %c0_i32 = arith.constant 0 : i32
    %c0_i32_0 = arith.constant 0 : i32
    %c0_i32_1 = arith.constant 0 : i32
    return %arg0, %c0_i32, %c0_i32_0 : i32, i32, i32
  }
  func.func @transform_8(%arg0: i32) -> (i32, i32, i32) {
    %c0_i32 = arith.constant 0 : i32
    %c0_i32_0 = arith.constant 0 : i32
    %c0_i32_1 = arith.constant 0 : i32
    return %arg0, %c0_i32, %c0_i32_0 : i32, i32, i32
  }
  func.func @transform_9(%arg0: i32) -> (i32, i32, i32) {
    %c0_i32 = arith.constant 0 : i32
    %c0_i32_0 = arith.constant 0 : i32
    %c0_i32_1 = arith.constant 0 : i32
    return %arg0, %c0_i32, %c0_i32_0 : i32, i32, i32
  }
  func.func @transform_10(%arg0: i32) -> (i32, i32) {
    %c0_i32 = arith.constant 0 : i32
    %c0_i32_0 = arith.constant 0 : i32
    %c0_i32_1 = arith.constant 0 : i32
    return %c0_i32, %c0_i32_0 : i32, i32
  }
  func.func @transform_11(%arg0: i32) -> (i32, i32) {
    %c0_i32 = arith.constant 0 : i32
    %c0_i32_0 = arith.constant 0 : i32
    %c0_i32_1 = arith.constant 0 : i32
    return %c0_i32, %c0_i32_0 : i32, i32
  }
  func.func @transform_12(%arg0: i32) -> (i32, i32) {
    %c0_i32 = arith.constant 0 : i32
    %c0_i32_0 = arith.constant 0 : i32
    %c0_i32_1 = arith.constant 0 : i32
    return %c0_i32, %c0_i32_0 : i32, i32
  }
  func.func @transform_13(%arg0: i32) -> (i32, i32) {
    %c0_i32 = arith.constant 0 : i32
    %c0_i32_0 = arith.constant 0 : i32
    %c0_i32_1 = arith.constant 0 : i32
    return %c0_i32, %c0_i32_0 : i32, i32
  }
  func.func @transform_14(%arg0: i32) -> (i32, i32) {
    %c0_i32 = arith.constant 0 : i32
    %c0_i32_0 = arith.constant 0 : i32
    %c0_i32_1 = arith.constant 0 : i32
    return %c0_i32, %c0_i32_0 : i32, i32
  }
}

</mosaic_0001>

<llo_original>
// kernel: ginet_forward.1
$region0: #{ginet_forward.1}
  #allocation0 [shape = 'u32[]', space=smem, size = 0x4, offset = 0x4, fixed_abs, tag = 'smem constant byte address 0x4 - core index']
  #allocation1 [shape = 'u32[144,128]{1,0:T(1,128)}', space=vmem, size = 0x12000, scoped, tag = 'internal scratch']
  #allocation2 [shape = 'f32[16,128]{1,0:T(8,128)}', space=vmem, size = 0x2000, scoped, tag = 'scratch operand']
  %s0 = inlined_call_operand.vmem [shape: bf16[16,16], index: 0, kind: input, shape index: {}]
  %s1 = inlined_call_operand.vmem [shape: f32[16,128], index: 1, kind: input, shape index: {}]
  %s2 = inlined_call_operand.vmem [shape: bf16[16,8], index: 2, kind: input, shape index: {}]
  %s3 = inlined_call_operand.vmem [shape: bf16[5,8,128], index: 3, kind: input, shape index: {}]
  %s4 = inlined_call_operand.vmem [shape: bf16[5,128,128], index: 4, kind: input, shape index: {}]
  %s5 = inlined_call_operand.vmem [shape: f32[5,1,128], index: 5, kind: input, shape index: {}]
  %s6 = inlined_call_operand.vmem [shape: bf16[5,128,128], index: 6, kind: input, shape index: {}]
  %s7 = inlined_call_operand.vmem [shape: f32[5,1,128], index: 7, kind: input, shape index: {}]
  %s8 = inlined_call_operand.vmem [shape: f32[5,1,128], index: 8, kind: input, shape index: {}]
  %s9 = inlined_call_operand.vmem [shape: f32[5,1,128], index: 9, kind: input, shape index: {}]
  %s10 = inlined_call_operand.vmem [shape: bf16[8,16], index: 10, kind: input, shape index: {}]
  %s11 = inlined_call_operand.vmem [shape: bf16[128,128], index: 11, kind: input, shape index: {}]
  %s12 = inlined_call_operand.vmem [shape: f32[1,128], index: 12, kind: input, shape index: {}]
  %s13 = inlined_call_operand.vmem [shape: f32[8,128], index: 13, kind: output, shape index: {0}]
  %s14 = inlined_call_operand.vmem [shape: f32[8,128], index: 14, kind: output, shape index: {1}]
  %15 = xla_tuple %s13, %s14
  %s16 = sld [smem:[#allocation0]]
  $region101: #{ginet_forward.1} parent=0
    _
  %s18 = ssub.s32 1, %s16
  %s19 = scalar_select 0, %s18, %s16
  loop: start=0, step=1, limit=7
  $region2: #{ginet_forward.1} parent=0 // loop_pre_header
    _
  $region3: #{ginet_forward.1} parent=0 // loop_header
    %s21 = sphi 0, %s25
    %p22 = scmp.ge.s32.totalorder %s21, 7
    %s29 = sphi 0, %s29
    %s31 = sphi 0, %s29
    %s32 = sphi 0, %s31
    %s46 = sphi 0, %s32
    %s50 = sphi 0, %s50
    %s52 = sphi 0, %s50
    %s53 = sphi 0, %s52
    %s67 = sphi 0, %s53
    %s71 = sphi 0, %s71
    %s73 = sphi 0, %s71
    %s74 = sphi 0, %s73
    %s88 = sphi 0, %s74
    %s94 = sphi 0, %s96
    %s97 = sphi 0, %s94
    %s98 = sphi 0, %s97
    %s114 = sphi 0, %s98
    %s120 = sphi 0, %s122
    %s123 = sphi 0, %s120
    %s124 = sphi 0, %s123
    %s140 = sphi 0, %s124
    %s146 = sphi 0, %s148
    %s149 = sphi 0, %s146
    %s150 = sphi 0, %s149
    %s166 = sphi 0, %s150
    %s172 = sphi 0, %s174
    %s175 = sphi 0, %s172
    %s176 = sphi 0, %s175
    %s192 = sphi 0, %s176
    %s198 = sphi 0, %s200
    %s201 = sphi 0, %s198
    %s202 = sphi 0, %s201
    %s218 = sphi 0, %s202
    %s224 = sphi 0, %s226
    %s227 = sphi 0, %s224
    %s228 = sphi 0, %s227
    %s244 = sphi 0, %s228
    %s250 = sphi 0, %s252
    %s253 = sphi 0, %s250
    %s254 = sphi 0, %s253
    %s270 = sphi 0, %s254
    %s274 = sphi 0, %s274
    %s276 = sphi 0, %s274
    %s277 = sphi 0, %s276
    %s291 = sphi 0, %s277
    %s295 = sphi 0, %s295
    %s297 = sphi 0, %s295
    %s298 = sphi 0, %s297
    %s312 = sphi 0, %s298
    %s316 = sphi 0, %s316
    %s318 = sphi 0, %s316
    %s319 = sphi 0, %s318
    %s333 = sphi 0, %s319
    %s337 = sphi 0, %s337
    %s339 = sphi 0, %s337
    %s340 = sphi 0, %s339
    %s354 = sphi 0, %s340
    %s358 = sphi 0, %s358
    %s360 = sphi 0, %s358
    %s361 = sphi 0, %s360
    %s375 = sphi 0, %s361
  $region4: #{ginet_forward.1} parent=0 // loop_header_branch
    %24 = sbr.rel (%p22) target = $region8
  $region5: #{ginet_forward.1} parent=0 // loop_body
    %s26 = ssub.s32 %s21, 1
    %s27 = ssub.s32 %s21, 2
    %s28 = sadd.s32 %s21, 1
    %s30 = sadd.s32 %s29, 1
    %p33 = scmp.eq.s32.totalorder %s21, 4
    %p34 = scmp.ne.s32.totalorder %s29, %s31
    %p35 = scmp.eq.s32.totalorder %s21, 0
    %p36 = por %p34, %p35
    %p37 = scmp.ne.s32.totalorder %s29, %s31
    %p38 = scmp.eq.s32.totalorder %s26, 4
    %p39 = por %p37, %p38
    %p40 = scmp.ne.s32.totalorder %s31, %s32
    %p41 = scmp.eq.s32.totalorder %s26, 0
    %p42 = por %p40, %p41
    %p43 = scmp.ne.s32.totalorder %s31, %s32
    %p44 = scmp.eq.s32.totalorder %s27, 4
    %p45 = por %p43, %p44
    %p47 = scmp.ne.s32.totalorder %s32, %s46
    %p48 = scmp.eq.s32.totalorder %s27, 0
    %p49 = por %p47, %p48
    %s51 = sadd.s32 %s50, 1
    %p54 = scmp.eq.s32.totalorder %s21, 4
    %p55 = scmp.ne.s32.totalorder %s50, %s52
    %p56 = scmp.eq.s32.totalorder %s21, 0
    %p57 = por %p55, %p56
    %p58 = scmp.ne.s32.totalorder %s50, %s52
    %p59 = scmp.eq.s32.totalorder %s26, 4
    %p60 = por %p58, %p59
    %p61 = scmp.ne.s32.totalorder %s52, %s53
    %p62 = scmp.eq.s32.totalorder %s26, 0
    %p63 = por %p61, %p62
    %p64 = scmp.ne.s32.totalorder %s52, %s53
    %p65 = scmp.eq.s32.totalorder %s27, 4
    %p66 = por %p64, %p65
    %p68 = scmp.ne.s32.totalorder %s53, %s67
    %p69 = scmp.eq.s32.totalorder %s27, 0
    %p70 = por %p68, %p69
    %s72 = sadd.s32 %s71, 1
    %p75 = scmp.eq.s32.totalorder %s21, 4
    %p76 = scmp.ne.s32.totalorder %s71, %s73
    %p77 = scmp.eq.s32.totalorder %s21, 0
    %p78 = por %p76, %p77
    %p79 = scmp.ne.s32.totalorder %s71, %s73
    %p80 = scmp.eq.s32.totalorder %s26, 4
    %p81 = por %p79, %p80
    %p82 = scmp.ne.s32.totalorder %s73, %s74
    %p83 = scmp.eq.s32.totalorder %s26, 0
    %p84 = por %p82, %p83
    %p85 = scmp.ne.s32.totalorder %s73, %s74
    %p86 = scmp.eq.s32.totalorder %s27, 4
    %p87 = por %p85, %p86
    %p89 = scmp.ne.s32.totalorder %s74, %s88
    %p90 = scmp.eq.s32.totalorder %s27, 0
    %p91 = por %p89, %p90
    %s92 = ssub.s32 %s21, %s28
    %p93 = scmp.eq.s32.totalorder %s92, 0
    %s95 = sadd.s32 %s94, 1
    %s96 = scalar_select %p93, %s94, %s95
    %p99 = pneg %p93
    %p100 = scmp.eq.s32.totalorder %s21, 4
    %p101 = por %p99, %p100
    %p102 = scmp.ne.s32.totalorder %s94, %s97
    %p103 = scmp.eq.s32.totalorder %s21, 0
    %p104 = por %p102, %p103
    %p105 = scmp.ne.s32.totalorder %s94, %s97
    %p106 = scmp.eq.s32.totalorder %s26, 4
    %p107 = por %p105, %p106
    %p108 = scmp.ne.s32.totalorder %s97, %s98
    %p109 = scmp.eq.s32.totalorder %s26, 0
    %p110 = por %p108, %p109
    %p111 = scmp.ne.s32.totalorder %s97, %s98
    %p112 = scmp.eq.s32.totalorder %s27, 4
    %p113 = por %p111, %p112
    %p115 = scmp.ne.s32.totalorder %s98, %s114
    %p116 = scmp.eq.s32.totalorder %s27, 0
    %p117 = por %p115, %p116
    %s118 = ssub.s32 %s21, %s28
    %p119 = scmp.eq.s32.totalorder %s118, 0
    %s121 = sadd.s32 %s120, 1
    %s122 = scalar_select %p119, %s120, %s121
    %p125 = pneg %p119
    %p126 = scmp.eq.s32.totalorder %s21, 4
    %p127 = por %p125, %p126
    %p128 = scmp.ne.s32.totalorder %s120, %s123
    %p129 = scmp.eq.s32.totalorder %s21, 0
    %p130 = por %p128, %p129
    %p131 = scmp.ne.s32.totalorder %s120, %s123
    %p132 = scmp.eq.s32.totalorder %s26, 4
    %p133 = por %p131, %p132
    %p134 = scmp.ne.s32.totalorder %s123, %s124
    %p135 = scmp.eq.s32.totalorder %s26, 0
    %p136 = por %p134, %p135
    %p137 = scmp.ne.s32.totalorder %s123, %s124
    %p138 = scmp.eq.s32.totalorder %s27, 4
    %p139 = por %p137, %p138
    %p141 = scmp.ne.s32.totalorder %s124, %s140
    %p142 = scmp.eq.s32.totalorder %s27, 0
    %p143 = por %p141, %p142
    %s144 = ssub.s32 %s21, %s28
    %p145 = scmp.eq.s32.totalorder %s144, 0
    %s147 = sadd.s32 %s146, 1
    %s148 = scalar_select %p145, %s146, %s147
    %p151 = pneg %p145
    %p152 = scmp.eq.s32.totalorder %s21, 4
    %p153 = por %p151, %p152
    %p154 = scmp.ne.s32.totalorder %s146, %s149
    %p155 = scmp.eq.s32.totalorder %s21, 0
    %p156 = por %p154, %p155
    %p157 = scmp.ne.s32.totalorder %s146, %s149
    %p158 = scmp.eq.s32.totalorder %s26, 4
    %p159 = por %p157, %p158
    %p160 = scmp.ne.s32.totalorder %s149, %s150
    %p161 = scmp.eq.s32.totalorder %s26, 0
    %p162 = por %p160, %p161
    %p163 = scmp.ne.s32.totalorder %s149, %s150
    %p164 = scmp.eq.s32.totalorder %s27, 4
    %p165 = por %p163, %p164
    %p167 = scmp.ne.s32.totalorder %s150, %s166
    %p168 = scmp.eq.s32.totalorder %s27, 0
    %p169 = por %p167, %p168
    %s170 = ssub.s32 %s21, %s28
    %p171 = scmp.eq.s32.totalorder %s170, 0
    %s173 = sadd.s32 %s172, 1
    %s174 = scalar_select %p171, %s172, %s173
    %p177 = pneg %p171
    %p178 = scmp.eq.s32.totalorder %s21, 4
    %p179 = por %p177, %p178
    %p180 = scmp.ne.s32.totalorder %s172, %s175
    %p181 = scmp.eq.s32.totalorder %s21, 0
    %p182 = por %p180, %p181
    %p183 = scmp.ne.s32.totalorder %s172, %s175
    %p184 = scmp.eq.s32.totalorder %s26, 4
    %p185 = por %p183, %p184
    %p186 = scmp.ne.s32.totalorder %s175, %s176
    %p187 = scmp.eq.s32.totalorder %s26, 0
    %p188 = por %p186, %p187
    %p189 = scmp.ne.s32.totalorder %s175, %s176
    %p190 = scmp.eq.s32.totalorder %s27, 4
    %p191 = por %p189, %p190
    %p193 = scmp.ne.s32.totalorder %s176, %s192
    %p194 = scmp.eq.s32.totalorder %s27, 0
    %p195 = por %p193, %p194
    %s196 = ssub.s32 %s21, %s28
    %p197 = scmp.eq.s32.totalorder %s196, 0
    %s199 = sadd.s32 %s198, 1
    %s200 = scalar_select %p197, %s198, %s199
    %p203 = pneg %p197
    %p204 = scmp.eq.s32.totalorder %s21, 4
    %p205 = por %p203, %p204
    %p206 = scmp.ne.s32.totalorder %s198, %s201
    %p207 = scmp.eq.s32.totalorder %s21, 0
    %p208 = por %p206, %p207
    %p209 = scmp.ne.s32.totalorder %s198, %s201
    %p210 = scmp.eq.s32.totalorder %s26, 4
    %p211 = por %p209, %p210
    %p212 = scmp.ne.s32.totalorder %s201, %s202
    %p213 = scmp.eq.s32.totalorder %s26, 0
    %p214 = por %p212, %p213
    %p215 = scmp.ne.s32.totalorder %s201, %s202
    %p216 = scmp.eq.s32.totalorder %s27, 4
    %p217 = por %p215, %p216
    %p219 = scmp.ne.s32.totalorder %s202, %s218
    %p220 = scmp.eq.s32.totalorder %s27, 0
    %p221 = por %p219, %p220
    %s222 = ssub.s32 %s21, %s28
    %p223 = scmp.eq.s32.totalorder %s222, 0
    %s225 = sadd.s32 %s224, 1
    %s226 = scalar_select %p223, %s224, %s225
    %p229 = pneg %p223
    %p230 = scmp.eq.s32.totalorder %s21, 4
    %p231 = por %p229, %p230
    %p232 = scmp.ne.s32.totalorder %s224, %s227
    %p233 = scmp.eq.s32.totalorder %s21, 0
    %p234 = por %p232, %p233
    %p235 = scmp.ne.s32.totalorder %s224, %s227
    %p236 = scmp.eq.s32.totalorder %s26, 4
    %p237 = por %p235, %p236
    %p238 = scmp.ne.s32.totalorder %s227, %s228
    %p239 = scmp.eq.s32.totalorder %s26, 0
    %p240 = por %p238, %p239
    %p241 = scmp.ne.s32.totalorder %s227, %s228
    %p242 = scmp.eq.s32.totalorder %s27, 4
    %p243 = por %p241, %p242
    %p245 = scmp.ne.s32.totalorder %s228, %s244
    %p246 = scmp.eq.s32.totalorder %s27, 0
    %p247 = por %p245, %p246
    %s248 = ssub.s32 %s21, %s28
    %p249 = scmp.eq.s32.totalorder %s248, 0
    %s251 = sadd.s32 %s250, 1
    %s252 = scalar_select %p249, %s250, %s251
    %p255 = pneg %p249
    %p256 = scmp.eq.s32.totalorder %s21, 4
    %p257 = por %p255, %p256
    %p258 = scmp.ne.s32.totalorder %s250, %s253
    %p259 = scmp.eq.s32.totalorder %s21, 0
    %p260 = por %p258, %p259
    %p261 = scmp.ne.s32.totalorder %s250, %s253
    %p262 = scmp.eq.s32.totalorder %s26, 4
    %p263 = por %p261, %p262
    %p264 = scmp.ne.s32.totalorder %s253, %s254
    %p265 = scmp.eq.s32.totalorder %s26, 0
    %p266 = por %p264, %p265
    %p267 = scmp.ne.s32.totalorder %s253, %s254
    %p268 = scmp.eq.s32.totalorder %s27, 4
    %p269 = por %p267, %p268
    %p271 = scmp.ne.s32.totalorder %s254, %s270
    %p272 = scmp.eq.s32.totalorder %s27, 0
    %p273 = por %p271, %p272
    %s275 = sadd.s32 %s274, 1
    %p278 = scmp.eq.s32.totalorder %s21, 4
    %p279 = scmp.ne.s32.totalorder %s274, %s276
    %p280 = scmp.eq.s32.totalorder %s21, 0
    %p281 = por %p279, %p280
    %p282 = scmp.ne.s32.totalorder %s274, %s276
    %p283 = scmp.eq.s32.totalorder %s26, 4
    %p284 = por %p282, %p283
    %p285 = scmp.ne.s32.totalorder %s276, %s277
    %p286 = scmp.eq.s32.totalorder %s26, 0
    %p287 = por %p285, %p286
    %p288 = scmp.ne.s32.totalorder %s276, %s277
    %p289 = scmp.eq.s32.totalorder %s27, 4
    %p290 = por %p288, %p289
    %p292 = scmp.ne.s32.totalorder %s277, %s291
    %p293 = scmp.eq.s32.totalorder %s27, 0
    %p294 = por %p292, %p293
    %s296 = sadd.s32 %s295, 1
    %p299 = scmp.eq.s32.totalorder %s21, 4
    %p300 = scmp.ne.s32.totalorder %s295, %s297
    %p301 = scmp.eq.s32.totalorder %s21, 0
    %p302 = por %p300, %p301
    %p303 = scmp.ne.s32.totalorder %s295, %s297
    %p304 = scmp.eq.s32.totalorder %s26, 4
    %p305 = por %p303, %p304
    %p306 = scmp.ne.s32.totalorder %s297, %s298
    %p307 = scmp.eq.s32.totalorder %s26, 0
    %p308 = por %p306, %p307
    %p309 = scmp.ne.s32.totalorder %s297, %s298
    %p310 = scmp.eq.s32.totalorder %s27, 4
    %p311 = por %p309, %p310
    %p313 = scmp.ne.s32.totalorder %s298, %s312
    %p314 = scmp.eq.s32.totalorder %s27, 0
    %p315 = por %p313, %p314
    %s317 = sadd.s32 %s316, 1
    %p320 = scmp.eq.s32.totalorder %s21, 4
    %p321 = scmp.ne.s32.totalorder %s316, %s318
    %p322 = scmp.eq.s32.totalorder %s21, 0
    %p323 = por %p321, %p322
    %p324 = scmp.ne.s32.totalorder %s316, %s318
    %p325 = scmp.eq.s32.totalorder %s26, 4
    %p326 = por %p324, %p325
    %p327 = scmp.ne.s32.totalorder %s318, %s319
    %p328 = scmp.eq.s32.totalorder %s26, 0
    %p329 = por %p327, %p328
    %p330 = scmp.ne.s32.totalorder %s318, %s319
    %p331 = scmp.eq.s32.totalorder %s27, 4
    %p332 = por %p330, %p331
    %p334 = scmp.ne.s32.totalorder %s319, %s333
    %p335 = scmp.eq.s32.totalorder %s27, 0
    %p336 = por %p334, %p335
    %s338 = sadd.s32 %s337, 1
    %p341 = scmp.eq.s32.totalorder %s21, 4
    %p342 = scmp.ne.s32.totalorder %s337, %s339
    %p343 = scmp.eq.s32.totalorder %s21, 0
    %p344 = por %p342, %p343
    %p345 = scmp.ne.s32.totalorder %s337, %s339
    %p346 = scmp.eq.s32.totalorder %s26, 4
    %p347 = por %p345, %p346
    %p348 = scmp.ne.s32.totalorder %s339, %s340
    %p349 = scmp.eq.s32.totalorder %s26, 0
    %p350 = por %p348, %p349
    %p351 = scmp.ne.s32.totalorder %s339, %s340
    %p352 = scmp.eq.s32.totalorder %s27, 4
    %p353 = por %p351, %p352
    %p355 = scmp.ne.s32.totalorder %s340, %s354
    %p356 = scmp.eq.s32.totalorder %s27, 0
    %p357 = por %p355, %p356
    %s359 = sadd.s32 %s358, 1
    %p362 = scmp.eq.s32.totalorder %s21, 4
    %p363 = scmp.ne.s32.totalorder %s358, %s360
    %p364 = scmp.eq.s32.totalorder %s21, 0
    %p365 = por %p363, %p364
    %p366 = scmp.ne.s32.totalorder %s358, %s360
    %p367 = scmp.eq.s32.totalorder %s26, 4
    %p368 = por %p366, %p367
    %p369 = scmp.ne.s32.totalorder %s360, %s361
    %p370 = scmp.eq.s32.totalorder %s26, 0
    %p371 = por %p369, %p370
    %p372 = scmp.ne.s32.totalorder %s360, %s361
    %p373 = scmp.eq.s32.totalorder %s27, 4
    %p374 = por %p372, %p373
    %p376 = scmp.ne.s32.totalorder %s361, %s375
    %p377 = scmp.eq.s32.totalorder %s27, 0
    %p378 = por %p376, %p377
    %p379 = scmp.le.s32.totalorder 1, %s21
    %p380 = scmp.lt.s32.totalorder %s21, 6
    %p381 = pnand %p379, %p380
    %p382 = pneg %p381
    // Predicated region
    $region9: #{ginet_forward.1} parent=5 // pred_check
      _
    $region10: #{ginet_forward.1} parent=5 // pred_check_branch
      %384 = sbr.rel (%p381) target = $region12
    $region11: #{ginet_forward.1} parent=5 // pred_region
      %s385 = ssub.s32 %s21, 1
      // Predicated region
      $region13: #{ginet_forward.1} parent=11 // pred_check
        %p386 = pneg %p42
      $region14: #{ginet_forward.1} parent=11 // pred_check_branch
        %388 = sbr.rel (%p386) target = $region16
      $region15: #{ginet_forward.1} parent=11 // pred_region
        _
      $region16: #{ginet_forward.1} parent=11 // pred_fallthru
        _
      // Predicated region
      $region17: #{ginet_forward.1} parent=11 // pred_check
        %p389 = pneg %p63
      $region18: #{ginet_forward.1} parent=11 // pred_check_branch
        %391 = sbr.rel (%p389) target = $region20
      $region19: #{ginet_forward.1} parent=11 // pred_region
        _
      $region20: #{ginet_forward.1} parent=11 // pred_fallthru
        _
      // Predicated region
      $region21: #{ginet_forward.1} parent=11 // pred_check
        %p392 = pneg %p84
      $region22: #{ginet_forward.1} parent=11 // pred_check_branch
        %394 = sbr.rel (%p392) target = $region24
      $region23: #{ginet_forward.1} parent=11 // pred_region
        _
      $region24: #{ginet_forward.1} parent=11 // pred_fallthru
        _
      // Predicated region
      $region25: #{ginet_forward.1} parent=11 // pred_check
        %p395 = pneg %p287
      $region26: #{ginet_forward.1} parent=11 // pred_check_branch
        %397 = sbr.rel (%p395) target = $region28
      $region27: #{ginet_forward.1} parent=11 // pred_region
        _
      $region28: #{ginet_forward.1} parent=11 // pred_fallthru
        _
      // Predicated region
      $region29: #{ginet_forward.1} parent=11 // pred_check
        %p398 = pneg %p308
      $region30: #{ginet_forward.1} parent=11 // pred_check_branch
        %400 = sbr.rel (%p398) target = $region32
      $region31: #{ginet_forward.1} parent=11 // pred_region
        _
      $region32: #{ginet_forward.1} parent=11 // pred_fallthru
        _
      // Predicated region
      $region33: #{ginet_forward.1} parent=11 // pred_check
        %p401 = pneg %p329
      $region34: #{ginet_forward.1} parent=11 // pred_check_branch
        %403 = sbr.rel (%p401) target = $region36
      $region35: #{ginet_forward.1} parent=11 // pred_region
        _
      $region36: #{ginet_forward.1} parent=11 // pred_fallthru
        _
    $region12: #{ginet_forward.1} parent=5 // pred_fallthru
      _
    %p404 = scmp.lt.s32.totalorder %s21, 5
    // Predicated region
    $region37: #{ginet_forward.1} parent=5 // pred_check
      %p405 = pneg %p404
    $region38: #{ginet_forward.1} parent=5 // pred_check_branch
      %407 = sbr.rel (%p405) target = $region40
    $region39: #{ginet_forward.1} parent=5 // pred_region
      // Predicated region
      $region41: #{ginet_forward.1} parent=39 // pred_check
        %p408 = pneg %p104
      $region42: #{ginet_forward.1} parent=39 // pred_check_branch
        %410 = sbr.rel (%p408) target = $region44
      $region43: #{ginet_forward.1} parent=39 // pred_region
        %p411 = scmp.lt.s32.totalorder %s21, 4
        %s412 = scalar_select %p411, %s21, 4
        %s413 = smul.addr %s412, 4
        %s414 = scalar_lea.vmem %s3, %s413
      $region44: #{ginet_forward.1} parent=39 // pred_fallthru
        _
      // Predicated region
      $region45: #{ginet_forward.1} parent=39 // pred_check
        %p415 = pneg %p130
      $region46: #{ginet_forward.1} parent=39 // pred_check_branch
        %417 = sbr.rel (%p415) target = $region48
      $region47: #{ginet_forward.1} parent=39 // pred_region
        %p418 = scmp.lt.s32.totalorder %s21, 4
        %s419 = scalar_select %p418, %s21, 4
        %s420 = smul.addr %s419, 16
        %s421 = smul.addr %s420, 4
        %s422 = scalar_lea.vmem %s4, %s421
      $region48: #{ginet_forward.1} parent=39 // pred_fallthru
        _
      // Predicated region
      $region49: #{ginet_forward.1} parent=39 // pred_check
        %p423 = pneg %p156
      $region50: #{ginet_forward.1} parent=39 // pred_check_branch
        %425 = sbr.rel (%p423) target = $region52
      $region51: #{ginet_forward.1} parent=39 // pred_region
        %p426 = scmp.lt.s32.totalorder %s21, 4
        %s427 = scalar_select %p426, %s21, 4
        %s428 = scalar_lea.vmem %s5, %s427
      $region52: #{ginet_forward.1} parent=39 // pred_fallthru
        _
      // Predicated region
      $region53: #{ginet_forward.1} parent=39 // pred_check
        %p429 = pneg %p182
      $region54: #{ginet_forward.1} parent=39 // pred_check_branch
        %431 = sbr.rel (%p429) target = $region56
      $region55: #{ginet_forward.1} parent=39 // pred_region
        %p432 = scmp.lt.s32.totalorder %s21, 4
        %s433 = scalar_select %p432, %s21, 4
        %s434 = smul.addr %s433, 16
        %s435 = smul.addr %s434, 4
        %s436 = scalar_lea.vmem %s6, %s435
      $region56: #{ginet_forward.1} parent=39 // pred_fallthru
        _
      // Predicated region
      $region57: #{ginet_forward.1} parent=39 // pred_check
        %p437 = pneg %p208
      $region58: #{ginet_forward.1} parent=39 // pred_check_branch
        %439 = sbr.rel (%p437) target = $region60
      $region59: #{ginet_forward.1} parent=39 // pred_region
        %p440 = scmp.lt.s32.totalorder %s21, 4
        %s441 = scalar_select %p440, %s21, 4
        %s442 = scalar_lea.vmem %s7, %s441
      $region60: #{ginet_forward.1} parent=39 // pred_fallthru
        _
      // Predicated region
      $region61: #{ginet_forward.1} parent=39 // pred_check
        %p443 = pneg %p234
      $region62: #{ginet_forward.1} parent=39 // pred_check_branch
        %445 = sbr.rel (%p443) target = $region64
      $region63: #{ginet_forward.1} parent=39 // pred_region
        %p446 = scmp.lt.s32.totalorder %s21, 4
        %s447 = scalar_select %p446, %s21, 4
        %s448 = scalar_lea.vmem %s8, %s447
      $region64: #{ginet_forward.1} parent=39 // pred_fallthru
        _
      // Predicated region
      $region65: #{ginet_forward.1} parent=39 // pred_check
        %p449 = pneg %p260
      $region66: #{ginet_forward.1} parent=39 // pred_check_branch
        %451 = sbr.rel (%p449) target = $region68
      $region67: #{ginet_forward.1} parent=39 // pred_region
        %p452 = scmp.lt.s32.totalorder %s21, 4
        %s453 = scalar_select %p452, %s21, 4
        %s454 = scalar_lea.vmem %s9, %s453
      $region68: #{ginet_forward.1} parent=39 // pred_fallthru
        _
    $region40: #{ginet_forward.1} parent=5 // pred_fallthru
      _
    %p455 = scmp.le.s32.totalorder 1, %s21
    %p456 = scmp.lt.s32.totalorder %s21, 6
    %p457 = pnand %p455, %p456
    %p458 = pneg %p457
    // Predicated region
    $region69: #{ginet_forward.1} parent=5 // pred_check
      _
    $region70: #{ginet_forward.1} parent=5 // pred_check_branch
      %460 = sbr.rel (%p457) target = $region72
    $region71: #{ginet_forward.1} parent=5 // pred_region
      %s461 = ssub.s32 %s21, 1
      %p462 = pneg %p42
      %p463 = pneg %p39
      %p464 = pneg %p63
      %p465 = pneg %p60
      %p466 = pneg %p84
      %p467 = pneg %p81
      %p468 = scmp.lt.s32.totalorder %s26, 4
      %s469 = scalar_select %p468, %s26, 4
      %s470 = smul.addr %s469, 4
      %s471 = scalar_lea.vmem %s3, %s470
      %p472 = pneg %p110
      %p473 = pneg %p107
      %p474 = scmp.lt.s32.totalorder %s26, 4
      %s475 = scalar_select %p474, %s26, 4
      %s476 = smul.addr %s475, 16
      %s477 = smul.addr %s476, 4
      %s478 = scalar_lea.vmem %s4, %s477
      %p479 = pneg %p136
      %p480 = pneg %p133
      %p481 = scmp.lt.s32.totalorder %s26, 4
      %s482 = scalar_select %p481, %s26, 4
      %s483 = scalar_lea.vmem %s5, %s482
      %p484 = pneg %p162
      %p485 = pneg %p159
      %p486 = scmp.lt.s32.totalorder %s26, 4
      %s487 = scalar_select %p486, %s26, 4
      %s488 = smul.addr %s487, 16
      %s489 = smul.addr %s488, 4
      %s490 = scalar_lea.vmem %s6, %s489
      %p491 = pneg %p188
      %p492 = pneg %p185
      %p493 = scmp.lt.s32.totalorder %s26, 4
      %s494 = scalar_select %p493, %s26, 4
      %s495 = scalar_lea.vmem %s7, %s494
      %p496 = pneg %p214
      %p497 = pneg %p211
      %p498 = scmp.lt.s32.totalorder %s26, 4
      %s499 = scalar_select %p498, %s26, 4
      %s500 = scalar_lea.vmem %s8, %s499
      %p501 = pneg %p240
      %p502 = pneg %p237
      %p503 = scmp.lt.s32.totalorder %s26, 4
      %s504 = scalar_select %p503, %s26, 4
      %s505 = scalar_lea.vmem %s9, %s504
      %p506 = pneg %p266
      %p507 = pneg %p263
      %p508 = pneg %p287
      %p509 = pneg %p284
      %p510 = pneg %p308
      %p511 = pneg %p305
      %p512 = pneg %p329
      %p513 = pneg %p326
      %p514 = pneg %p350
      %p515 = pneg %p347
      %p516 = pneg %p371
      %p517 = pneg %p368
      %p518 = scmp.lt.s32.totalorder %s26, 4
      %s519 = scalar_select %p518, %s26, 4
      %s520 = smul.addr %s519, 4
      %s521 = scalar_lea.vmem %s3, %s520
      %p522 = scmp.lt.s32.totalorder %s26, 4
      %s523 = scalar_select %p522, %s26, 4
      %s524 = smul.addr %s523, 16
      %s525 = smul.addr %s524, 4
      %s526 = scalar_lea.vmem %s4, %s525
      %p527 = scmp.lt.s32.totalorder %s26, 4
      %s528 = scalar_select %p527, %s26, 4
      %s529 = scalar_lea.vmem %s5, %s528
      %p530 = scmp.lt.s32.totalorder %s26, 4
      %s531 = scalar_select %p530, %s26, 4
      %s532 = smul.addr %s531, 16
      %s533 = smul.addr %s532, 4
      %s534 = scalar_lea.vmem %s6, %s533
      %p535 = scmp.lt.s32.totalorder %s26, 4
      %s536 = scalar_select %p535, %s26, 4
      %s537 = scalar_lea.vmem %s7, %s536
      %p538 = scmp.lt.s32.totalorder %s26, 4
      %s539 = scalar_select %p538, %s26, 4
      %s540 = scalar_lea.vmem %s8, %s539
      %p541 = scmp.lt.s32.totalorder %s26, 4
      %s542 = scalar_select %p541, %s26, 4
      %s543 = scalar_lea.vmem %s9, %s542
      %p545 = scmp.eq.s32.totalorder %s26, 0
      // Predicated region
      $region73: #{ginet_forward.1} parent=71 // pred_check
        %p546 = pneg %p545
      $region74: #{ginet_forward.1} parent=71 // pred_check_branch
        %548 = sbr.rel (%p546) target = $region76
      $region75: #{ginet_forward.1} parent=71 // pred_region
        %v549 = vld [vmem:[%s1] sm:$0xff]
        %v550 = vld [vmem:[%s1 + $0x8] sm:$0xff]
        %551 = vst [vmem:[#allocation2] sm:$0xff] %v549
        %552 = vst [vmem:[#allocation2 + $0x8] sm:$0xff] %v550
      $region76: #{ginet_forward.1} parent=71 // pred_fallthru
        _
      %v553 = vld [vmem:[#allocation2] sm:$0xff]
      %v554 = vld [vmem:[#allocation2 + $0x8] sm:$0xff]
      %v555 = vld [vmem:[%s2] sm:$0xf]
      %v556 = vld [vmem:[%s2 + $0x4] sm:$0xf]
      %v557 = vld [vmem:[%s521] sm:$0xf]
      %v560 = vunpack.c.l.b16 %v555
      %v561 = vunpack.c.l.b16 %v556
      %v562 = vpack.c.b16 %v561, %v560
      %vm563 = vcmask 64512
      %v565 = vsel %vm563, %v562, 0
      %vm567 = vcmask 1043456
      %v569 = vsel %vm567, %v557, 0
      %571 = vmatprep.subr.bf16.mxu0 0
      %572 = vmatpush1.bf16.msra.mxu0 %v569
      %573 = vmatprep.subr.bf16.mxu0 0
      %574 = vmatpush1.bf16.msra.mxu0 0
      %575 = vmatprep.subr.bf16.mxu0 0
      %576 = vmatpush1.bf16.msra.mxu0 0
      %577 = vmatprep.subr.bf16.mxu0 0
      %578 = vmatpush1.bf16.msra.mxu0 0
      %579 = vmatprep.subr.bf16.mxu0 0
      %580 = vmatpush1.bf16.msra.mxu0 0
      %581 = vmatprep.subr.bf16.mxu0 0
      %582 = vmatpush1.bf16.msra.mxu0 0
      %583 = vmatprep.subr.bf16.mxu0 0
      %584 = vmatpush1.bf16.msra.mxu0 0
      %585 = vmatprep.subr.bf16.mxu0 0
      %586 = vmatpush1.bf16.msra.mxu0 0
      %587 = vmatprep.subr.bf16.mxu0 0
      %588 = vmatpush1.bf16.msra.mxu0 0
      %589 = vmatprep.subr.bf16.mxu0 0
      %590 = vmatpush1.bf16.msra.mxu0 0
      %591 = vmatprep.subr.bf16.mxu0 0
      %592 = vmatpush1.bf16.msra.mxu0 0
      %593 = vmatprep.subr.bf16.mxu0 0
      %594 = vmatpush1.bf16.msra.mxu0 0
      %595 = vmatprep.subr.bf16.mxu0 0
      %596 = vmatpush1.bf16.msra.mxu0 0
      %597 = vmatprep.subr.bf16.mxu0 0
      %598 = vmatpush1.bf16.msra.mxu0 0
      %599 = vmatprep.subr.bf16.mxu0 0
      %600 = vmatpush1.bf16.msra.mxu0 0
      %601 = vmatprep.subr.bf16.mxu0 0
      %602 = vmatpush1.bf16.msra.mxu0 0
      %603 = vmatprep.mubr.bf16.mxu0 0
      %604 = vmatmul.mubr.bf16.gmra.mrb[0].mxu0 %v565
      %v605 = vpop.f32.mrb[0].mxu0
      %v606 = vadd.f32 0.0, %v605
      %v607 = vpop.f32.mrb[0].mxu0
      %v608 = vpop.f32.mrb[0].mxu0
      %v609 = vadd.f32 0.0, %v608
      %v610 = vpop.f32.mrb[0].mxu0
      %611 = vdwg.mxu0
      %v612 = vld [vmem:[%s0] sm:$0xf]
      %v613 = vld [vmem:[%s0 + $0x4] sm:$0xf]
      %v614 = vpack.c.bf16 %v554, %v553
      %v617 = vunpack.c.l.b16 %v612
      %v618 = vunpack.c.l.b16 %v613
      %v619 = vpack.c.b16 %v618, %v617
      %vm620 = vcmask 130048
      %v622 = vsel %vm620, %v619, 0
      %624 = vmatprep.subr.bf16.mxu0 0
      %625 = vmatpush1.bf16.msra.mxu0 %v614
      %626 = vmatprep.subr.bf16.mxu0 0
      %627 = vmatpush1.bf16.msra.mxu0 0
      %628 = vmatprep.subr.bf16.mxu0 0
      %629 = vmatpush1.bf16.msra.mxu0 0
      %630 = vmatprep.subr.bf16.mxu0 0
      %631 = vmatpush1.bf16.msra.mxu0 0
      %632 = vmatprep.subr.bf16.mxu0 0
      %633 = vmatpush1.bf16.msra.mxu0 0
      %634 = vmatprep.subr.bf16.mxu0 0
      %635 = vmatpush1.bf16.msra.mxu0 0
      %636 = vmatprep.subr.bf16.mxu0 0
      %637 = vmatpush1.bf16.msra.mxu0 0
      %638 = vmatprep.subr.bf16.mxu0 0
      %639 = vmatpush1.bf16.msra.mxu0 0
      %640 = vmatprep.subr.bf16.mxu0 0
      %641 = vmatpush1.bf16.msra.mxu0 0
      %642 = vmatprep.subr.bf16.mxu0 0
      %643 = vmatpush1.bf16.msra.mxu0 0
      %644 = vmatprep.subr.bf16.mxu0 0
      %645 = vmatpush1.bf16.msra.mxu0 0
      %646 = vmatprep.subr.bf16.mxu0 0
      %647 = vmatpush1.bf16.msra.mxu0 0
      %648 = vmatprep.subr.bf16.mxu0 0
      %649 = vmatpush1.bf16.msra.mxu0 0
      %650 = vmatprep.subr.bf16.mxu0 0
      %651 = vmatpush1.bf16.msra.mxu0 0
      %652 = vmatprep.subr.bf16.mxu0 0
      %653 = vmatpush1.bf16.msra.mxu0 0
      %654 = vmatprep.subr.bf16.mxu0 0
      %655 = vmatpush1.bf16.msra.mxu0 0
      %656 = vmatprep.mubr.bf16.mxu0 0
      %657 = vmatmul.mubr.bf16.gmra.mrb[0].mxu0 %v622
      %v658 = vpop.f32.mrb[0].mxu0
      %v659 = vadd.f32 %v606, %v658
      %v660 = vpop.f32.mrb[0].mxu0
      %v661 = vpop.f32.mrb[0].mxu0
      %v662 = vadd.f32 %v609, %v661
      %v663 = vpop.f32.mrb[0].mxu0
      %664 = vdwg.mxu0
      %v665 = vpack.c.bf16 %v662, %v659
      %v666 = vld [vmem:[%s526] sm:$0xf]
      %v667 = vld [vmem:[%s526 + $0x4] sm:$0xf]
      %v668 = vld [vmem:[%s526 + $0x8] sm:$0xf]
      %v669 = vld [vmem:[%s526 + $0xc] sm:$0xf]
      %v670 = vld [vmem:[%s526 + $0x10] sm:$0xf]
      %v671 = vld [vmem:[%s526 + $0x14] sm:$0xf]
      %v672 = vld [vmem:[%s526 + $0x18] sm:$0xf]
      %v673 = vld [vmem:[%s526 + $0x1c] sm:$0xf]
      %v674 = vld [vmem:[%s526 + $0x20] sm:$0xf]
      %v675 = vld [vmem:[%s526 + $0x24] sm:$0xf]
      %v676 = vld [vmem:[%s526 + $0x28] sm:$0xf]
      %v677 = vld [vmem:[%s526 + $0x2c] sm:$0xf]
      %v678 = vld [vmem:[%s526 + $0x30] sm:$0xf]
      %v679 = vld [vmem:[%s526 + $0x34] sm:$0xf]
      %v680 = vld [vmem:[%s526 + $0x38] sm:$0xf]
      %v681 = vld [vmem:[%s526 + $0x3c] sm:$0xf]
      %v682 = vld [vmem:[%s529] sm:$0x1]
      %v684 = vlaneseq
      %v685 = vshrl.u32 %v684, 7
      %v686 = vsub.s32 0, %v685
      %v687 = vrot.slane %v682, %v686
      %v705 = vunpack.c.l.b16 %v666
      %v706 = vunpack.c.l.b16 %v667
      %v707 = vunpack.c.l.b16 %v668
      %v708 = vunpack.c.l.b16 %v669
      %v709 = vunpack.c.l.b16 %v670
      %v710 = vunpack.c.l.b16 %v671
      %v711 = vunpack.c.l.b16 %v672
      %v712 = vunpack.c.l.b16 %v673
      %v713 = vunpack.c.l.b16 %v674
      %v714 = vunpack.c.l.b16 %v675
      %v715 = vunpack.c.l.b16 %v676
      %v716 = vunpack.c.l.b16 %v677
      %v717 = vunpack.c.l.b16 %v678
      %v718 = vunpack.c.l.b16 %v679
      %v719 = vunpack.c.l.b16 %v680
      %v720 = vunpack.c.l.b16 %v681
      %v721 = vpack.c.b16 %v706, %v705
      %v722 = vpack.c.b16 %v708, %v707
      %v723 = vpack.c.b16 %v710, %v709
      %v724 = vpack.c.b16 %v712, %v711
      %v725 = vpack.c.b16 %v714, %v713
      %v726 = vpack.c.b16 %v716, %v715
      %v727 = vpack.c.b16 %v718, %v717
      %v728 = vpack.c.b16 %v720, %v719
      %737 = vmatprep.subr.bf16.mxu0 0
      %738 = vmatpush1.bf16.msra.mxu0 %v721
      %739 = vmatprep.subr.bf16.mxu0 0
      %740 = vmatpush1.bf16.msra.mxu0 %v722
      %741 = vmatprep.subr.bf16.mxu0 0
      %742 = vmatpush1.bf16.msra.mxu0 %v723
      %743 = vmatprep.subr.bf16.mxu0 0
      %744 = vmatpush1.bf16.msra.mxu0 %v724
      %745 = vmatprep.subr.bf16.mxu0 0
      %746 = vmatpush1.bf16.msra.mxu0 %v725
      %747 = vmatprep.subr.bf16.mxu0 0
      %748 = vmatpush1.bf16.msra.mxu0 %v726
      %749 = vmatprep.subr.bf16.mxu0 0
      %750 = vmatpush1.bf16.msra.mxu0 %v727
      %751 = vmatprep.subr.bf16.mxu0 0
      %752 = vmatpush1.bf16.msra.mxu0 %v728
      %753 = vmatprep.subr.bf16.mxu0 0
      %754 = vmatpush1.bf16.msra.mxu0 0
      %755 = vmatprep.subr.bf16.mxu0 0
      %756 = vmatpush1.bf16.msra.mxu0 0
      %757 = vmatprep.subr.bf16.mxu0 0
      %758 = vmatpush1.bf16.msra.mxu0 0
      %759 = vmatprep.subr.bf16.mxu0 0
      %760 = vmatpush1.bf16.msra.mxu0 0
      %761 = vmatprep.subr.bf16.mxu0 0
      %762 = vmatpush1.bf16.msra.mxu0 0
      %763 = vmatprep.subr.bf16.mxu0 0
      %764 = vmatpush1.bf16.msra.mxu0 0
      %765 = vmatprep.subr.bf16.mxu0 0
      %766 = vmatpush1.bf16.msra.mxu0 0
      %767 = vmatprep.subr.bf16.mxu0 0
      %768 = vmatpush1.bf16.msra.mxu0 0
      %769 = vmatprep.mubr.bf16.mxu0 0
      %770 = vmatmul.mubr.bf16.gmra.mrb[0].mxu0 %v665
      %v771 = vpop.f32.mrb[0].mxu0
      %v772 = vadd.f32 %v687, %v771
      %v773 = vpop.f32.mrb[0].mxu0
      %v774 = vpop.f32.mrb[0].mxu0
      %v775 = vadd.f32 %v687, %v774
      %v776 = vpop.f32.mrb[0].mxu0
      %777 = vdwg.mxu0
      %v778 = vmax.f32 %v772, 0.0
      %v779 = vmax.f32 %v775, 0.0
      %v780 = vpack.c.bf16 %v779, %v778
      %v781 = vld [vmem:[%s534] sm:$0xf]
      %v782 = vld [vmem:[%s534 + $0x4] sm:$0xf]
      %v783 = vld [vmem:[%s534 + $0x8] sm:$0xf]
      %v784 = vld [vmem:[%s534 + $0xc] sm:$0xf]
      %v785 = vld [vmem:[%s534 + $0x10] sm:$0xf]
      %v786 = vld [vmem:[%s534 + $0x14] sm:$0xf]
      %v787 = vld [vmem:[%s534 + $0x18] sm:$0xf]
      %v788 = vld [vmem:[%s534 + $0x1c] sm:$0xf]
      %v789 = vld [vmem:[%s534 + $0x20] sm:$0xf]
      %v790 = vld [vmem:[%s534 + $0x24] sm:$0xf]
      %v791 = vld [vmem:[%s534 + $0x28] sm:$0xf]
      %v792 = vld [vmem:[%s534 + $0x2c] sm:$0xf]
      %v793 = vld [vmem:[%s534 + $0x30] sm:$0xf]
      %v794 = vld [vmem:[%s534 + $0x34] sm:$0xf]
      %v795 = vld [vmem:[%s534 + $0x38] sm:$0xf]
      %v796 = vld [vmem:[%s534 + $0x3c] sm:$0xf]
      %v797 = vld [vmem:[%s537] sm:$0x1]
      %v799 = vlaneseq
      %v800 = vshrl.u32 %v799, 7
      %v801 = vsub.s32 0, %v800
      %v802 = vrot.slane %v797, %v801
      %v820 = vunpack.c.l.b16 %v781
      %v821 = vunpack.c.l.b16 %v782
      %v822 = vunpack.c.l.b16 %v783
      %v823 = vunpack.c.l.b16 %v784
      %v824 = vunpack.c.l.b16 %v785
      %v825 = vunpack.c.l.b16 %v786
      %v826 = vunpack.c.l.b16 %v787
      %v827 = vunpack.c.l.b16 %v788
      %v828 = vunpack.c.l.b16 %v789
      %v829 = vunpack.c.l.b16 %v790
      %v830 = vunpack.c.l.b16 %v791
      %v831 = vunpack.c.l.b16 %v792
      %v832 = vunpack.c.l.b16 %v793
      %v833 = vunpack.c.l.b16 %v794
      %v834 = vunpack.c.l.b16 %v795
      %v835 = vunpack.c.l.b16 %v796
      %v836 = vpack.c.b16 %v821, %v820
      %v837 = vpack.c.b16 %v823, %v822
      %v838 = vpack.c.b16 %v825, %v824
      %v839 = vpack.c.b16 %v827, %v826
      %v840 = vpack.c.b16 %v829, %v828
      %v841 = vpack.c.b16 %v831, %v830
      %v842 = vpack.c.b16 %v833, %v832
      %v843 = vpack.c.b16 %v835, %v834
      %852 = vmatprep.subr.bf16.mxu0 0
      %853 = vmatpush1.bf16.msra.mxu0 %v836
      %854 = vmatprep.subr.bf16.mxu0 0
      %855 = vmatpush1.bf16.msra.mxu0 %v837
      %856 = vmatprep.subr.bf16.mxu0 0
      %857 = vmatpush1.bf16.msra.mxu0 %v838
      %858 = vmatprep.subr.bf16.mxu0 0
      %859 = vmatpush1.bf16.msra.mxu0 %v839
      %860 = vmatprep.subr.bf16.mxu0 0
      %861 = vmatpush1.bf16.msra.mxu0 %v840
      %862 = vmatprep.subr.bf16.mxu0 0
      %863 = vmatpush1.bf16.msra.mxu0 %v841
      %864 = vmatprep.subr.bf16.mxu0 0
      %865 = vmatpush1.bf16.msra.mxu0 %v842
      %866 = vmatprep.subr.bf16.mxu0 0
      %867 = vmatpush1.bf16.msra.mxu0 %v843
      %868 = vmatprep.subr.bf16.mxu0 0
      %869 = vmatpush1.bf16.msra.mxu0 0
      %870 = vmatprep.subr.bf16.mxu0 0
      %871 = vmatpush1.bf16.msra.mxu0 0
      %872 = vmatprep.subr.bf16.mxu0 0
      %873 = vmatpush1.bf16.msra.mxu0 0
      %874 = vmatprep.subr.bf16.mxu0 0
      %875 = vmatpush1.bf16.msra.mxu0 0
      %876 = vmatprep.subr.bf16.mxu0 0
      %877 = vmatpush1.bf16.msra.mxu0 0
      %878 = vmatprep.subr.bf16.mxu0 0
      %879 = vmatpush1.bf16.msra.mxu0 0
      %880 = vmatprep.subr.bf16.mxu0 0
      %881 = vmatpush1.bf16.msra.mxu0 0
      %882 = vmatprep.subr.bf16.mxu0 0
      %883 = vmatpush1.bf16.msra.mxu0 0
      %884 = vmatprep.mubr.bf16.mxu0 0
      %885 = vmatmul.mubr.bf16.gmra.mrb[0].mxu0 %v780
      %v886 = vpop.f32.mrb[0].mxu0
      %v887 = vadd.f32 %v802, %v886
      %v888 = vpop.f32.mrb[0].mxu0
      %v889 = vpop.f32.mrb[0].mxu0
      %v890 = vadd.f32 %v802, %v889
      %v891 = vpop.f32.mrb[0].mxu0
      %892 = vdwg.mxu0
      %v893 = vadd.f32 %v887, %v890
      %v894 = vrot.slane %v893, 4
      %v895 = vadd.f32 %v893, %v894
      %v896 = vrot.slane %v895, 2
      %v897 = vadd.f32 %v895, %v896
      %v898 = vrot.slane %v897, 1
      %v899 = vadd.f32 %v897, %v898
      %v900 = vmul.f32 %v887, %v887
      %v901 = vmul.f32 %v890, %v890
      %v902 = vadd.f32 %v900, %v901
      %v903 = vrot.slane %v902, 4
      %v904 = vadd.f32 %v902, %v903
      %v905 = vrot.slane %v904, 2
      %v906 = vadd.f32 %v904, %v905
      %v907 = vrot.slane %v906, 1
      %v908 = vadd.f32 %v906, %v907
      %v909 = vmul.f32 %v899, 0.0625
      %v910 = vmul.f32 %v908, 0.0625
      %v911 = vmul.f32 %v909, %v909
      %v912 = vsub.f32 %v910, %v911
      %v913 = vmax.f32 %v912, 0.0
      %v914 = vld [vmem:[%s540] sm:$0x1]
      %v915 = vadd.f32 %v913, 1e-05
      %v916 = vrsqrt.pop %v915
      %v917 = vmul.f32 %v914, %v916
      %v918 = vld [vmem:[%s543] sm:$0x1]
      %v919 = vmul.f32 %v909, %v917
      %v920 = vsub.f32 %v918, %v919
      %v922 = vlaneseq
      %v923 = vshrl.u32 %v922, 7
      %v924 = vsub.s32 0, %v923
      %v925 = vrot.slane %v917, %v924
      %v927 = vmul.f32 %v887, %v925
      %v928 = vmul.f32 %v890, %v925
      %v930 = vlaneseq
      %v931 = vshrl.u32 %v930, 7
      %v932 = vsub.s32 0, %v931
      %v933 = vrot.slane %v920, %v932
      %v935 = vadd.f32 %v927, %v933
      %v936 = vadd.f32 %v928, %v933
      %v937 = vmax.f32 %v935, 0.0
      %v938 = vmax.f32 %v936, 0.0
      %939 = vst [vmem:[#allocation2] sm:$0xff] %v937
      %940 = vst [vmem:[#allocation2 + $0x8] sm:$0xff] %v938
      %p941 = scmp.eq.s32.totalorder %s26, 4
      // Predicated region
      $region77: #{ginet_forward.1} parent=71 // pred_check
        %p942 = pneg %p941
      $region78: #{ginet_forward.1} parent=71 // pred_check_branch
        %944 = sbr.rel (%p942) target = $region80
      $region79: #{ginet_forward.1} parent=71 // pred_region
        %v945 = vld [vmem:[%s10] sm:$0xf]
        %v946 = vpack.c.bf16 %v936, %v935
        %v948 = vsel %vm620, %v945, 0
        %950 = vmatprep.subr.bf16.mxu0 0
        %951 = vmatpush1.bf16.msra.mxu0 %v946
        %952 = vmatprep.subr.bf16.mxu0 0
        %953 = vmatpush1.bf16.msra.mxu0 0
        %954 = vmatprep.subr.bf16.mxu0 0
        %955 = vmatpush1.bf16.msra.mxu0 0
        %956 = vmatprep.subr.bf16.mxu0 0
        %957 = vmatpush1.bf16.msra.mxu0 0
        %958 = vmatprep.subr.bf16.mxu0 0
        %959 = vmatpush1.bf16.msra.mxu0 0
        %960 = vmatprep.subr.bf16.mxu0 0
        %961 = vmatpush1.bf16.msra.mxu0 0
        %962 = vmatprep.subr.bf16.mxu0 0
        %963 = vmatpush1.bf16.msra.mxu0 0
        %964 = vmatprep.subr.bf16.mxu0 0
        %965 = vmatpush1.bf16.msra.mxu0 0
        %966 = vmatprep.subr.bf16.mxu0 0
        %967 = vmatpush1.bf16.msra.mxu0 0
        %968 = vmatprep.subr.bf16.mxu0 0
        %969 = vmatpush1.bf16.msra.mxu0 0
        %970 = vmatprep.subr.bf16.mxu0 0
        %971 = vmatpush1.bf16.msra.mxu0 0
        %972 = vmatprep.subr.bf16.mxu0 0
        %973 = vmatpush1.bf16.msra.mxu0 0
        %974 = vmatprep.subr.bf16.mxu0 0
        %975 = vmatpush1.bf16.msra.mxu0 0
        %976 = vmatprep.subr.bf16.mxu0 0
        %977 = vmatpush1.bf16.msra.mxu0 0
        %978 = vmatprep.subr.bf16.mxu0 0
        %979 = vmatpush1.bf16.msra.mxu0 0
        %980 = vmatprep.subr.bf16.mxu0 0
        %981 = vmatpush1.bf16.msra.mxu0 0
        %982 = vmatprep.mubr.bf16.mxu0 0
        %983 = vmatmul.mubr.bf16.gmra.mrb[0].mxu0 %v948
        %v984 = vpop.f32.mrb[0].mxu0
        %v985 = vadd.f32 0.0, %v984
        %v986 = vpop.f32.mrb[0].mxu0
        %v987 = vpop.f32.mrb[0].mxu0
        %v988 = vpop.f32.mrb[0].mxu0
        %989 = vdwg.mxu0
        %990 = vst [vmem:[%s14] sm:$0xff] %v985
        %v991 = vpack.c.bf16 %v985, %v985
        %v992 = vld [vmem:[%s11] sm:$0xf]
        %v993 = vld [vmem:[%s11 + $0x4] sm:$0xf]
        %v994 = vld [vmem:[%s11 + $0x8] sm:$0xf]
        %v995 = vld [vmem:[%s11 + $0xc] sm:$0xf]
        %v996 = vld [vmem:[%s11 + $0x10] sm:$0xf]
        %v997 = vld [vmem:[%s11 + $0x14] sm:$0xf]
        %v998 = vld [vmem:[%s11 + $0x18] sm:$0xf]
        %v999 = vld [vmem:[%s11 + $0x1c] sm:$0xf]
        %v1000 = vld [vmem:[%s11 + $0x20] sm:$0xf]
        %v1001 = vld [vmem:[%s11 + $0x24] sm:$0xf]
        %v1002 = vld [vmem:[%s11 + $0x28] sm:$0xf]
        %v1003 = vld [vmem:[%s11 + $0x2c] sm:$0xf]
        %v1004 = vld [vmem:[%s11 + $0x30] sm:$0xf]
        %v1005 = vld [vmem:[%s11 + $0x34] sm:$0xf]
        %v1006 = vld [vmem:[%s11 + $0x38] sm:$0xf]
        %v1007 = vld [vmem:[%s11 + $0x3c] sm:$0xf]
        %v1008 = vld [vmem:[%s12] sm:$0x1]
        %v1010 = vlaneseq
        %v1011 = vshrl.u32 %v1010, 7
        %v1012 = vsub.s32 0, %v1011
        %v1013 = vrot.slane %v1008, %v1012
        %v1031 = vunpack.c.l.b16 %v992
        %v1032 = vunpack.c.l.b16 %v993
        %v1033 = vunpack.c.l.b16 %v994
        %v1034 = vunpack.c.l.b16 %v995
        %v1035 = vunpack.c.l.b16 %v996
        %v1036 = vunpack.c.l.b16 %v997
        %v1037 = vunpack.c.l.b16 %v998
        %v1038 = vunpack.c.l.b16 %v999
        %v1039 = vunpack.c.l.b16 %v1000
        %v1040 = vunpack.c.l.b16 %v1001
        %v1041 = vunpack.c.l.b16 %v1002
        %v1042 = vunpack.c.l.b16 %v1003
        %v1043 = vunpack.c.l.b16 %v1004
        %v1044 = vunpack.c.l.b16 %v1005
        %v1045 = vunpack.c.l.b16 %v1006
        %v1046 = vunpack.c.l.b16 %v1007
        %v1047 = vpack.c.b16 %v1032, %v1031
        %v1048 = vpack.c.b16 %v1034, %v1033
        %v1049 = vpack.c.b16 %v1036, %v1035
        %v1050 = vpack.c.b16 %v1038, %v1037
        %v1051 = vpack.c.b16 %v1040, %v1039
        %v1052 = vpack.c.b16 %v1042, %v1041
        %v1053 = vpack.c.b16 %v1044, %v1043
        %v1054 = vpack.c.b16 %v1046, %v1045
        %1063 = vmatprep.subr.bf16.mxu0 0
        %1064 = vmatpush1.bf16.msra.mxu0 %v1047
        %1065 = vmatprep.subr.bf16.mxu0 0
        %1066 = vmatpush1.bf16.msra.mxu0 %v1048
        %1067 = vmatprep.subr.bf16.mxu0 0
        %1068 = vmatpush1.bf16.msra.mxu0 %v1049
        %1069 = vmatprep.subr.bf16.mxu0 0
        %1070 = vmatpush1.bf16.msra.mxu0 %v1050
        %1071 = vmatprep.subr.bf16.mxu0 0
        %1072 = vmatpush1.bf16.msra.mxu0 %v1051
        %1073 = vmatprep.subr.bf16.mxu0 0
        %1074 = vmatpush1.bf16.msra.mxu0 %v1052
        %1075 = vmatprep.subr.bf16.mxu0 0
        %1076 = vmatpush1.bf16.msra.mxu0 %v1053
        %1077 = vmatprep.subr.bf16.mxu0 0
        %1078 = vmatpush1.bf16.msra.mxu0 %v1054
        %1079 = vmatprep.subr.bf16.mxu0 0
        %1080 = vmatpush1.bf16.msra.mxu0 0
        %1081 = vmatprep.subr.bf16.mxu0 0
        %1082 = vmatpush1.bf16.msra.mxu0 0
        %1083 = vmatprep.subr.bf16.mxu0 0
        %1084 = vmatpush1.bf16.msra.mxu0 0
        %1085 = vmatprep.subr.bf16.mxu0 0
        %1086 = vmatpush1.bf16.msra.mxu0 0
        %1087 = vmatprep.subr.bf16.mxu0 0
        %1088 = vmatpush1.bf16.msra.mxu0 0
        %1089 = vmatprep.subr.bf16.mxu0 0
        %1090 = vmatpush1.bf16.msra.mxu0 0
        %1091 = vmatprep.subr.bf16.mxu0 0
        %1092 = vmatpush1.bf16.msra.mxu0 0
        %1093 = vmatprep.subr.bf16.mxu0 0
        %1094 = vmatpush1.bf16.msra.mxu0 0
        %1095 = vmatprep.mubr.bf16.mxu0 0
        %1096 = vmatmul.mubr.bf16.gmra.mrb[0].mxu0 %v991
        %v1097 = vpop.f32.mrb[0].mxu0
        %v1098 = vadd.f32 %v1013, %v1097
        %v1099 = vpop.f32.mrb[0].mxu0
        %v1100 = vpop.f32.mrb[0].mxu0
        %v1101 = vpop.f32.mrb[0].mxu0
        %1102 = vdwg.mxu0
        %1103 = vst [vmem:[%s13] sm:$0xff] %v1098
      $region80: #{ginet_forward.1} parent=71 // pred_fallthru
        _
      // Predicated region
      $region81: #{ginet_forward.1} parent=71 // pred_check
        %p1104 = pneg %p347
      $region82: #{ginet_forward.1} parent=71 // pred_check_branch
        %1106 = sbr.rel (%p1104) target = $region84
      $region83: #{ginet_forward.1} parent=71 // pred_region
        _
      $region84: #{ginet_forward.1} parent=71 // pred_fallthru
        _
      // Predicated region
      $region85: #{ginet_forward.1} parent=71 // pred_check
        %p1107 = pneg %p368
      $region86: #{ginet_forward.1} parent=71 // pred_check_branch
        %1109 = sbr.rel (%p1107) target = $region88
      $region87: #{ginet_forward.1} parent=71 // pred_region
        _
      $region88: #{ginet_forward.1} parent=71 // pred_fallthru
        _
      // Predicated region
      $region89: #{ginet_forward.1} parent=71 // pred_check
        %p1110 = pneg %p347
      $region90: #{ginet_forward.1} parent=71 // pred_check_branch
        %1112 = sbr.rel (%p1110) target = $region92
      $region91: #{ginet_forward.1} parent=71 // pred_region
        _
      $region92: #{ginet_forward.1} parent=71 // pred_fallthru
        _
      // Predicated region
      $region93: #{ginet_forward.1} parent=71 // pred_check
        %p1113 = pneg %p368
      $region94: #{ginet_forward.1} parent=71 // pred_check_branch
        %1115 = sbr.rel (%p1113) target = $region96
      $region95: #{ginet_forward.1} parent=71 // pred_region
        _
      $region96: #{ginet_forward.1} parent=71 // pred_fallthru
        _
    $region72: #{ginet_forward.1} parent=5 // pred_fallthru
      _
    %p1116 = scmp.le.s32.totalorder 2, %s21
    // Predicated region
    $region97: #{ginet_forward.1} parent=5 // pred_check
      %p1117 = pneg %p1116
    $region98: #{ginet_forward.1} parent=5 // pred_check_branch
      %1119 = sbr.rel (%p1117) target = $region100
    $region99: #{ginet_forward.1} parent=5 // pred_region
      %s1120 = ssub.s32 %s21, 2
    $region100: #{ginet_forward.1} parent=5 // pred_fallthru
      _
  $region6: #{ginet_forward.1} parent=0 // loop_footer
    %s25 = sadd.s32 1, %s21
  $region7: #{ginet_forward.1} parent=0 // loop_footer_branch
    %20 = sbr.rel target = $region3
  $region8: #{ginet_forward.1} parent=0 // loop_exit
    _

</llo_original>
